<compile_context>
chip_gen: v7x
topology: tpu7x:2x2x1
jax: 0.10.0
libtpu: 0.0.40
codegen_flags: <defaults>
</compile_context>

<pallas_src>
import functools

import jax
import jax.numpy as jnp
from jax.experimental import pallas as pl
from jax.experimental.pallas import tpu as pltpu


KH = KW = 3          # conv kernel size
C1, C2 = 8, 16       # conv1 / conv2 output channels
NCLS, NPAD = 10, 128 # classes / padded lane width


# ------------------------------ fused kernel ------------------------------ #
def _fused_forward_kernel(x_ref, w1_ref, b1_ref, w2_ref, b2_ref,
                          wfc_ref, bfc_ref, o_ref, *, BT, H, W):
    """Full forward for one tile of BT images, entirely in VMEM.

    Row layout of every activation is y-major / image-minor: row r = y*BT + t.

    x_ref   : (H*BT, W)             f32   stacked input rows
    w1_ref  : (3, W, Wo1*C1)        bf16  conv1 weights, kron + column offset folded
    b1_ref  : (1, Wo1*C1)           f32
    w2_ref  : (3, Wo1*C1, Wo2*C2)   bf16  conv2 weights, kron + column offset folded
    b2_ref  : (1, Wo2*C2)           f32
    wfc_ref : (Ho2, Wo2*C2, 128)    bf16  FC weights (torch NCHW flatten folded in)
    bfc_ref : (1, 128)              f32
    o_ref   : (BT, 128)             f32   padded logits for this tile
    """
    Ho1, Wo1 = H - KH + 1, W - KW + 1
    Ho2, Wo2 = Ho1 - KH + 1, Wo1 - KW + 1
    R1, R2 = Ho1 * BT, Ho2 * BT
    bf16, f32 = jnp.bfloat16, jnp.float32

    # ---- conv1 + ReLU: 3 MXU matmuls (R1, W) x (W, Wo1*C1), sublane-only slices ----
    h1 = jnp.dot(x_ref[0:R1, :].astype(bf16), w1_ref[0],
                 preferred_element_type=f32)
    for i in range(1, KH):
        lhs = x_ref[i * BT:i * BT + R1, :].astype(bf16)
        h1 = h1 + jnp.dot(lhs, w1_ref[i], preferred_element_type=f32)
    h1 = jnp.maximum(h1 + b1_ref[...], 0.0)                   # f32 (R1, Wo1*C1)

    # ---- conv2 + ReLU: 3 MXU matmuls (R2, Wo1*C1) x (Wo1*C1, Wo2*C2) ----
    h2 = jnp.dot(h1[0:R2, :].astype(bf16), w2_ref[0],
                 preferred_element_type=f32)
    for i in range(1, KH):
        lhs = h1[i * BT:i * BT + R2, :].astype(bf16)
        h2 = h2 + jnp.dot(lhs, w2_ref[i], preferred_element_type=f32)
    h2 = jnp.maximum(h2 + b2_ref[...], 0.0)                   # f32 (R2, Wo2*C2)

    # ---- FC: Ho2 matmuls with M = BT (one contiguous sublane group per y) ----
    acc = jnp.zeros((BT, NPAD), f32)
    for y in range(Ho2):
        lhs = h2[y * BT:(y + 1) * BT, :].astype(bf16)          # (BT, Wo2*C2)
        acc = acc + jnp.dot(lhs, wfc_ref[y], preferred_element_type=f32)
    o_ref[...] = acc + bfc_ref[...]                            # full (8,128) vreg store


# --------------------------- parameter handling ---------------------------- #
def init_params(H=16, W=16):
    """Deterministic synthetic parameters matching the PyTorch module's shapes.

    Conv weights in HWIO; w_fc rows follow PyTorch's NCHW flatten order (c, y, x).
    """
    k = jax.random.PRNGKey(42)
    k1, k2, k3, k4, k5, k6 = jax.random.split(k, 6)
    Ho1, Wo1 = H - 2, W - 2
    Ho2, Wo2 = Ho1 - 2, Wo1 - 2
    fc_in = C2 * Ho2 * Wo2                 # LazyLinear infers 16*12*12 = 2304 for 16x16
    return {
        "w1": 0.1 * jax.random.normal(k1, (3, 3, 1, C1), jnp.float32),
        "b1": 0.1 * jax.random.normal(k2, (C1,), jnp.float32),
        "w2": 0.1 * jax.random.normal(k3, (3, 3, C1, C2), jnp.float32),
        "b2": 0.1 * jax.random.normal(k4, (C2,), jnp.float32),
        "w_fc": 0.02 * jax.random.normal(k5, (fc_in, NCLS), jnp.float32),
        "b_fc": 0.02 * jax.random.normal(k6, (NCLS,), jnp.float32),
    }


def prepare_kernel_params(params, H=16, W=16):
    """One-time repack of weights into the fused kernel's MXU-friendly layout."""
    Ho1, Wo1 = H - KH + 1, W - KW + 1
    Ho2, Wo2 = Ho1 - KH + 1, Wo1 - KW + 1
    f32, bf16 = jnp.float32, jnp.bfloat16

    w1, b1 = params["w1"].astype(f32), params["b1"].astype(f32)
    w2, b2 = params["w2"].astype(f32), params["b2"].astype(f32)

    # conv1: kron (block-diagonal) expansion with the kernel-column offset j folded
    # in, so the kernel LHS is the full-width row window (sublane-only shifts).
    #   w1_big[i][xin, xo*C1 + c] = w1[i, xin - xo, 0, c]   for 0 <= xin - xo < 3
    w1_big = jnp.zeros((KH, W, Wo1 * C1), f32)
    for i in range(KH):
        for j in range(KW):
            blk = jnp.kron(jnp.eye(Wo1, dtype=f32), w1[i, j, 0, :].reshape(1, C1))
            w1_big = w1_big.at[i, j:j + Wo1, :].add(blk)
    b1_big = jnp.tile(b1, Wo1).reshape(1, Wo1 * C1)

    #   w2_big[i][xin*C1 + cin, xo*C2 + co] = w2[i, xin - xo, cin, co]
    w2_big = jnp.zeros((KH, Wo1 * C1, Wo2 * C2), f32)
    for i in range(KH):
        for j in range(KW):
            blk = jnp.kron(jnp.eye(Wo2, dtype=f32), w2[i, j])
            w2_big = w2_big.at[i, j * C1:(j + Wo2) * C1, :].add(blk)
    b2_big = jnp.tile(b2, Wo2).reshape(1, Wo2 * C2)

    # FC: regroup torch's NCHW-flatten rows (c, y, x) into per-spatial-row blocks
    # whose K axis matches h2's lane layout (x*C2 + c); pad classes 10 -> 128.
    wfc = params["w_fc"].reshape(C2, Ho2, Wo2, NCLS).transpose(1, 2, 0, 3)
    wfc = wfc.reshape(Ho2, Wo2 * C2, NCLS)
    wfc = jnp.pad(wfc, ((0, 0), (0, 0), (0, NPAD - NCLS)))     # (Ho2, Wo2*C2, 128)
    bfc = jnp.pad(params["b_fc"], (0, NPAD - NCLS)).reshape(1, NPAD)

    return {"w1": w1_big.astype(bf16), "b1": b1_big.astype(f32),
            "w2": w2_big.astype(bf16), "b2": b2_big.astype(f32),
            "w_fc": wfc.astype(bf16), "b_fc": bfc.astype(f32)}


# ------------------------------ full forward ------------------------------ #
def image_classifier_forward(x_nchw, kp, BT=8):
    B, Cin, H, W = x_nchw.shape
    assert Cin == 1, Cin
    Ho1, Wo1 = H - KH + 1, W - KW + 1
    Ho2, Wo2 = Ho1 - KH + 1, Wo1 - KW + 1

    nt = -(-B // BT)                  # number of batch tiles (grid length)
    Bp = nt * BT                      # padded batch

    x2 = x_nchw[:, 0, :, :].astype(jnp.float32)                # (B, H, W)
    if Bp != B:                                                # pad last tile
        x2 = jnp.pad(x2, ((0, Bp - B), (0, 0), (0, 0)))
    # Restack to y-major / image-minor rows: row = tile*H*BT + y*BT + t.
    xs = x2.reshape(nt, BT, H, W).transpose(0, 2, 1, 3).reshape(nt * H * BT, W)

    kernel = functools.partial(_fused_forward_kernel, BT=BT, H=H, W=W)

    out = pl.pallas_call(
        kernel,
        out_shape=jax.ShapeDtypeStruct((Bp, NPAD), jnp.float32),
        grid=(nt,),                                            # one tile of BT images/step
        in_specs=[
            pl.BlockSpec((H * BT, W), lambda b: (b, 0)),                 # stacked images
            pl.BlockSpec((KH, W, Wo1 * C1), lambda b: (0, 0, 0)),        # conv1 weights
            pl.BlockSpec((1, Wo1 * C1), lambda b: (0, 0)),
            pl.BlockSpec((KH, Wo1 * C1, Wo2 * C2), lambda b: (0, 0, 0)), # conv2 weights
            pl.BlockSpec((1, Wo2 * C2), lambda b: (0, 0)),
            pl.BlockSpec((Ho2, Wo2 * C2, NPAD), lambda b: (0, 0, 0)),    # FC weights
            pl.BlockSpec((1, NPAD), lambda b: (0, 0)),
        ],
        out_specs=pl.BlockSpec((BT, NPAD), lambda b: (b, 0)),
        compiler_params=pltpu.CompilerParams(
            dimension_semantics=("parallel",)),                # megacore on v7x
    )(xs, kp["w1"], kp["b1"], kp["w2"], kp["b2"], kp["w_fc"], kp["b_fc"])

    return out[:B, :NCLS]                                      # (B, 10)


# ------------------------ pure-JAX reference check ------------------------- #
def _reference_forward(x_nchw, params):
    x = jnp.transpose(x_nchw, (0, 2, 3, 1))
    dn = ("NHWC", "HWIO", "NHWC")
    h1 = jax.lax.conv_general_dilated(x, params["w1"], (1, 1), "VALID",
                                      dimension_numbers=dn) + params["b1"]
    h1 = jnp.maximum(h1, 0.0)
    h2 = jax.lax.conv_general_dilated(h1, params["w2"], (1, 1), "VALID",
                                      dimension_numbers=dn) + params["b2"]
    h2 = jnp.maximum(h2, 0.0)
    feat = jnp.transpose(h2, (0, 3, 1, 2)).reshape(h2.shape[0], -1)  # NCHW flatten
    return feat @ params["w_fc"] + params["b_fc"]


if __name__ == "__main__":
    key = jax.random.PRNGKey(0)
    x = jax.random.normal(key, (2, 1, 16, 16), dtype=jnp.float32)    # batch=2, 1ch, 16x16

    params = init_params(H=16, W=16)
    kparams = prepare_kernel_params(params, H=16, W=16)              # one-time repack

    fwd = jax.jit(image_classifier_forward)
    out = jax.block_until_ready(fwd(x, kparams))
    assert out.shape == (2, 10), out.shape

    ref = _reference_forward(x, params)
    # bf16 matmul operands with f32 accumulation -> ~1e-3 absolute deviation.
    assert jnp.allclose(out, ref, atol=2e-2, rtol=2e-2), "mismatch vs reference"

    print("KERNEL_OK")
</pallas_src>

<mosaic_0001>
module attributes {stable_mosaic.version = 11 : i64} {
  func.func @_fused_forward_kernel(%arg0: i32, %arg1: memref<128x16xf32, #tpu.memory_space<vmem>>, %arg2: memref<3x16x112xbf16, #tpu.memory_space<vmem>>, %arg3: memref<1x112xf32, #tpu.memory_space<vmem>>, %arg4: memref<3x112x192xbf16, #tpu.memory_space<vmem>>, %arg5: memref<1x192xf32, #tpu.memory_space<vmem>>, %arg6: memref<12x192x128xbf16, #tpu.memory_space<vmem>>, %arg7: memref<1x128xf32, #tpu.memory_space<vmem>>, %arg8: memref<8x128xf32, #tpu.memory_space<vmem>>) attributes {dimension_semantics = [#tpu.dimension_semantics<parallel>], iteration_bounds = array<i64: 1>, scalar_prefetch = 0 : i64, scratch_operands = 0 : i64, tpu.core_type = #tpu.core_type<tc>, window_params = [{transform_indices = @transform_0, window_bounds = array<i64: 128, 16>}, {pipeline_mode = #tpu.pipeline_mode<synchronous>, transform_indices = @transform_1, window_bounds = array<i64: 3, 16, 112>}, {pipeline_mode = #tpu.pipeline_mode<synchronous>, transform_indices = @transform_2, window_bounds = array<i64: 1, 112>}, {pipeline_mode = #tpu.pipeline_mode<synchronous>, transform_indices = @transform_3, window_bounds = array<i64: 3, 112, 192>}, {pipeline_mode = #tpu.pipeline_mode<synchronous>, transform_indices = @transform_4, window_bounds = array<i64: 1, 192>}, {pipeline_mode = #tpu.pipeline_mode<synchronous>, transform_indices = @transform_5, window_bounds = array<i64: 12, 192, 128>}, {pipeline_mode = #tpu.pipeline_mode<synchronous>, transform_indices = @transform_6, window_bounds = array<i64: 1, 128>}, {transform_indices = @transform_7, window_bounds = array<i64: 8, 128>}]} {
    %c0 = arith.constant 0 : index
    %c0_0 = arith.constant 0 : index
    %0 = vector.load %arg1[%c0, %c0_0] : memref<128x16xf32, #tpu.memory_space<vmem>>, vector<112x16xf32>
    %1 = arith.truncf %0 : vector<112x16xf32> to vector<112x16xbf16>
    %c0_1 = arith.constant 0 : index
    %c0_2 = arith.constant 0 : index
    %c0_3 = arith.constant 0 : index
    %2 = vector.load %arg2[%c0_1, %c0_2, %c0_3] : memref<3x16x112xbf16, #tpu.memory_space<vmem>>, vector<1x16x112xbf16>
    %3 = vector.shape_cast %2 : vector<1x16x112xbf16> to vector<16x112xbf16>
    %cst = arith.constant dense<0.000000e+00> : vector<112x112xf32>
    %4 = tpu.matmul %1, %3, %cst {dimension_numbers = #tpu.dot_dimension_numbers<[1], [0], [0], [1], [0, 0, 1, 1], [], []>} : vector<112x16xbf16>, vector<16x112xbf16>, vector<112x112xf32> -> vector<112x112xf32>
    %c8 = arith.constant 8 : index
    %c0_4 = arith.constant 0 : index
    %5 = vector.load %arg1[%c8, %c0_4] : memref<128x16xf32, #tpu.memory_space<vmem>>, vector<112x16xf32>
    %6 = arith.truncf %5 : vector<112x16xf32> to vector<112x16xbf16>
    %c1 = arith.constant 1 : index
    %c0_5 = arith.constant 0 : index
    %c0_6 = arith.constant 0 : index
    %7 = vector.load %arg2[%c1, %c0_5, %c0_6] : memref<3x16x112xbf16, #tpu.memory_space<vmem>>, vector<1x16x112xbf16>
    %8 = vector.shape_cast %7 : vector<1x16x112xbf16> to vector<16x112xbf16>
    %cst_7 = arith.constant dense<0.000000e+00> : vector<112x112xf32>
    %9 = tpu.matmul %6, %8, %cst_7 {dimension_numbers = #tpu.dot_dimension_numbers<[1], [0], [0], [1], [0, 0, 1, 1], [], []>} : vector<112x16xbf16>, vector<16x112xbf16>, vector<112x112xf32> -> vector<112x112xf32>
    %10 = arith.addf %4, %9 : vector<112x112xf32>
    %c16 = arith.constant 16 : index
    %c0_8 = arith.constant 0 : index
    %11 = vector.load %arg1[%c16, %c0_8] : memref<128x16xf32, #tpu.memory_space<vmem>>, vector<112x16xf32>
    %12 = arith.truncf %11 : vector<112x16xf32> to vector<112x16xbf16>
    %c2 = arith.constant 2 : index
    %c0_9 = arith.constant 0 : index
    %c0_10 = arith.constant 0 : index
    %13 = vector.load %arg2[%c2, %c0_9, %c0_10] : memref<3x16x112xbf16, #tpu.memory_space<vmem>>, vector<1x16x112xbf16>
    %14 = vector.shape_cast %13 : vector<1x16x112xbf16> to vector<16x112xbf16>
    %cst_11 = arith.constant dense<0.000000e+00> : vector<112x112xf32>
    %15 = tpu.matmul %12, %14, %cst_11 {dimension_numbers = #tpu.dot_dimension_numbers<[1], [0], [0], [1], [0, 0, 1, 1], [], []>} : vector<112x16xbf16>, vector<16x112xbf16>, vector<112x112xf32> -> vector<112x112xf32>
    %16 = arith.addf %10, %15 : vector<112x112xf32>
    %c0_12 = arith.constant 0 : index
    %c0_13 = arith.constant 0 : index
    %17 = vector.load %arg3[%c0_12, %c0_13] : memref<1x112xf32, #tpu.memory_space<vmem>>, vector<1x112xf32>
    %18 = vector.broadcast %17 : vector<1x112xf32> to vector<112x112xf32>
    %19 = arith.addf %16, %18 : vector<112x112xf32>
    %cst_14 = arith.constant 0.000000e+00 : f32
    %20 = vector.broadcast %cst_14 : f32 to vector<112x112xf32>
    %21 = arith.maximumf %19, %20 : vector<112x112xf32>
    %22 = vector.extract_strided_slice %21 {offsets = [0, 0], sizes = [96, 112], strides = [1, 1]} : vector<112x112xf32> to vector<96x112xf32>
    %23 = arith.truncf %22 : vector<96x112xf32> to vector<96x112xbf16>
    %c0_15 = arith.constant 0 : index
    %c0_16 = arith.constant 0 : index
    %c0_17 = arith.constant 0 : index
    %24 = vector.load %arg4[%c0_15, %c0_16, %c0_17] : memref<3x112x192xbf16, #tpu.memory_space<vmem>>, vector<1x112x192xbf16>
    %25 = vector.shape_cast %24 : vector<1x112x192xbf16> to vector<112x192xbf16>
    %cst_18 = arith.constant dense<0.000000e+00> : vector<96x192xf32>
    %26 = tpu.matmul %23, %25, %cst_18 {dimension_numbers = #tpu.dot_dimension_numbers<[1], [0], [0], [1], [0, 0, 1, 1], [], []>} : vector<96x112xbf16>, vector<112x192xbf16>, vector<96x192xf32> -> vector<96x192xf32>
    %27 = vector.extract_strided_slice %21 {offsets = [8, 0], sizes = [96, 112], strides = [1, 1]} : vector<112x112xf32> to vector<96x112xf32>
    %28 = arith.truncf %27 : vector<96x112xf32> to vector<96x112xbf16>
    %c1_19 = arith.constant 1 : index
    %c0_20 = arith.constant 0 : index
    %c0_21 = arith.constant 0 : index
    %29 = vector.load %arg4[%c1_19, %c0_20, %c0_21] : memref<3x112x192xbf16, #tpu.memory_space<vmem>>, vector<1x112x192xbf16>
    %30 = vector.shape_cast %29 : vector<1x112x192xbf16> to vector<112x192xbf16>
    %cst_22 = arith.constant dense<0.000000e+00> : vector<96x192xf32>
    %31 = tpu.matmul %28, %30, %cst_22 {dimension_numbers = #tpu.dot_dimension_numbers<[1], [0], [0], [1], [0, 0, 1, 1], [], []>} : vector<96x112xbf16>, vector<112x192xbf16>, vector<96x192xf32> -> vector<96x192xf32>
    %32 = arith.addf %26, %31 : vector<96x192xf32>
    %33 = vector.extract_strided_slice %21 {offsets = [16, 0], sizes = [96, 112], strides = [1, 1]} : vector<112x112xf32> to vector<96x112xf32>
    %34 = arith.truncf %33 : vector<96x112xf32> to vector<96x112xbf16>
    %c2_23 = arith.constant 2 : index
    %c0_24 = arith.constant 0 : index
    %c0_25 = arith.constant 0 : index
    %35 = vector.load %arg4[%c2_23, %c0_24, %c0_25] : memref<3x112x192xbf16, #tpu.memory_space<vmem>>, vector<1x112x192xbf16>
    %36 = vector.shape_cast %35 : vector<1x112x192xbf16> to vector<112x192xbf16>
    %cst_26 = arith.constant dense<0.000000e+00> : vector<96x192xf32>
    %37 = tpu.matmul %34, %36, %cst_26 {dimension_numbers = #tpu.dot_dimension_numbers<[1], [0], [0], [1], [0, 0, 1, 1], [], []>} : vector<96x112xbf16>, vector<112x192xbf16>, vector<96x192xf32> -> vector<96x192xf32>
    %38 = arith.addf %32, %37 : vector<96x192xf32>
    %c0_27 = arith.constant 0 : index
    %c0_28 = arith.constant 0 : index
    %39 = vector.load %arg5[%c0_27, %c0_28] : memref<1x192xf32, #tpu.memory_space<vmem>>, vector<1x192xf32>
    %40 = vector.broadcast %39 : vector<1x192xf32> to vector<96x192xf32>
    %41 = arith.addf %38, %40 : vector<96x192xf32>
    %cst_29 = arith.constant 0.000000e+00 : f32
    %42 = vector.broadcast %cst_29 : f32 to vector<96x192xf32>
    %43 = arith.maximumf %41, %42 : vector<96x192xf32>
    %cst_30 = arith.constant 0.000000e+00 : f32
    %44 = vector.broadcast %cst_30 : f32 to vector<8x128xf32>
    %45 = vector.extract_strided_slice %43 {offsets = [0, 0], sizes = [8, 192], strides = [1, 1]} : vector<96x192xf32> to vector<8x192xf32>
    %46 = arith.truncf %45 : vector<8x192xf32> to vector<8x192xbf16>
    %c0_31 = arith.constant 0 : index
    %c0_32 = arith.constant 0 : index
    %c0_33 = arith.constant 0 : index
    %47 = vector.load %arg6[%c0_31, %c0_32, %c0_33] : memref<12x192x128xbf16, #tpu.memory_space<vmem>>, vector<1x192x128xbf16>
    %48 = vector.shape_cast %47 : vector<1x192x128xbf16> to vector<192x128xbf16>
    %cst_34 = arith.constant dense<0.000000e+00> : vector<8x128xf32>
    %49 = tpu.matmul %46, %48, %cst_34 {dimension_numbers = #tpu.dot_dimension_numbers<[1], [0], [0], [1], [0, 0, 1, 1], [], []>} : vector<8x192xbf16>, vector<192x128xbf16>, vector<8x128xf32> -> vector<8x128xf32>
    %50 = arith.addf %44, %49 : vector<8x128xf32>
    %51 = vector.extract_strided_slice %43 {offsets = [8, 0], sizes = [8, 192], strides = [1, 1]} : vector<96x192xf32> to vector<8x192xf32>
    %52 = arith.truncf %51 : vector<8x192xf32> to vector<8x192xbf16>
    %c1_35 = arith.constant 1 : index
    %c0_36 = arith.constant 0 : index
    %c0_37 = arith.constant 0 : index
    %53 = vector.load %arg6[%c1_35, %c0_36, %c0_37] : memref<12x192x128xbf16, #tpu.memory_space<vmem>>, vector<1x192x128xbf16>
    %54 = vector.shape_cast %53 : vector<1x192x128xbf16> to vector<192x128xbf16>
    %cst_38 = arith.constant dense<0.000000e+00> : vector<8x128xf32>
    %55 = tpu.matmul %52, %54, %cst_38 {dimension_numbers = #tpu.dot_dimension_numbers<[1], [0], [0], [1], [0, 0, 1, 1], [], []>} : vector<8x192xbf16>, vector<192x128xbf16>, vector<8x128xf32> -> vector<8x128xf32>
    %56 = arith.addf %50, %55 : vector<8x128xf32>
    %57 = vector.extract_strided_slice %43 {offsets = [16, 0], sizes = [8, 192], strides = [1, 1]} : vector<96x192xf32> to vector<8x192xf32>
    %58 = arith.truncf %57 : vector<8x192xf32> to vector<8x192xbf16>
    %c2_39 = arith.constant 2 : index
    %c0_40 = arith.constant 0 : index
    %c0_41 = arith.constant 0 : index
    %59 = vector.load %arg6[%c2_39, %c0_40, %c0_41] : memref<12x192x128xbf16, #tpu.memory_space<vmem>>, vector<1x192x128xbf16>
    %60 = vector.shape_cast %59 : vector<1x192x128xbf16> to vector<192x128xbf16>
    %cst_42 = arith.constant dense<0.000000e+00> : vector<8x128xf32>
    %61 = tpu.matmul %58, %60, %cst_42 {dimension_numbers = #tpu.dot_dimension_numbers<[1], [0], [0], [1], [0, 0, 1, 1], [], []>} : vector<8x192xbf16>, vector<192x128xbf16>, vector<8x128xf32> -> vector<8x128xf32>
    %62 = arith.addf %56, %61 : vector<8x128xf32>
    %63 = vector.extract_strided_slice %43 {offsets = [24, 0], sizes = [8, 192], strides = [1, 1]} : vector<96x192xf32> to vector<8x192xf32>
    %64 = arith.truncf %63 : vector<8x192xf32> to vector<8x192xbf16>
    %c3 = arith.constant 3 : index
    %c0_43 = arith.constant 0 : index
    %c0_44 = arith.constant 0 : index
    %65 = vector.load %arg6[%c3, %c0_43, %c0_44] : memref<12x192x128xbf16, #tpu.memory_space<vmem>>, vector<1x192x128xbf16>
    %66 = vector.shape_cast %65 : vector<1x192x128xbf16> to vector<192x128xbf16>
    %cst_45 = arith.constant dense<0.000000e+00> : vector<8x128xf32>
    %67 = tpu.matmul %64, %66, %cst_45 {dimension_numbers = #tpu.dot_dimension_numbers<[1], [0], [0], [1], [0, 0, 1, 1], [], []>} : vector<8x192xbf16>, vector<192x128xbf16>, vector<8x128xf32> -> vector<8x128xf32>
    %68 = arith.addf %62, %67 : vector<8x128xf32>
    %69 = vector.extract_strided_slice %43 {offsets = [32, 0], sizes = [8, 192], strides = [1, 1]} : vector<96x192xf32> to vector<8x192xf32>
    %70 = arith.truncf %69 : vector<8x192xf32> to vector<8x192xbf16>
    %c4 = arith.constant 4 : index
    %c0_46 = arith.constant 0 : index
    %c0_47 = arith.constant 0 : index
    %71 = vector.load %arg6[%c4, %c0_46, %c0_47] : memref<12x192x128xbf16, #tpu.memory_space<vmem>>, vector<1x192x128xbf16>
    %72 = vector.shape_cast %71 : vector<1x192x128xbf16> to vector<192x128xbf16>
    %cst_48 = arith.constant dense<0.000000e+00> : vector<8x128xf32>
    %73 = tpu.matmul %70, %72, %cst_48 {dimension_numbers = #tpu.dot_dimension_numbers<[1], [0], [0], [1], [0, 0, 1, 1], [], []>} : vector<8x192xbf16>, vector<192x128xbf16>, vector<8x128xf32> -> vector<8x128xf32>
    %74 = arith.addf %68, %73 : vector<8x128xf32>
    %75 = vector.extract_strided_slice %43 {offsets = [40, 0], sizes = [8, 192], strides = [1, 1]} : vector<96x192xf32> to vector<8x192xf32>
    %76 = arith.truncf %75 : vector<8x192xf32> to vector<8x192xbf16>
    %c5 = arith.constant 5 : index
    %c0_49 = arith.constant 0 : index
    %c0_50 = arith.constant 0 : index
    %77 = vector.load %arg6[%c5, %c0_49, %c0_50] : memref<12x192x128xbf16, #tpu.memory_space<vmem>>, vector<1x192x128xbf16>
    %78 = vector.shape_cast %77 : vector<1x192x128xbf16> to vector<192x128xbf16>
    %cst_51 = arith.constant dense<0.000000e+00> : vector<8x128xf32>
    %79 = tpu.matmul %76, %78, %cst_51 {dimension_numbers = #tpu.dot_dimension_numbers<[1], [0], [0], [1], [0, 0, 1, 1], [], []>} : vector<8x192xbf16>, vector<192x128xbf16>, vector<8x128xf32> -> vector<8x128xf32>
    %80 = arith.addf %74, %79 : vector<8x128xf32>
    %81 = vector.extract_strided_slice %43 {offsets = [48, 0], sizes = [8, 192], strides = [1, 1]} : vector<96x192xf32> to vector<8x192xf32>
    %82 = arith.truncf %81 : vector<8x192xf32> to vector<8x192xbf16>
    %c6 = arith.constant 6 : index
    %c0_52 = arith.constant 0 : index
    %c0_53 = arith.constant 0 : index
    %83 = vector.load %arg6[%c6, %c0_52, %c0_53] : memref<12x192x128xbf16, #tpu.memory_space<vmem>>, vector<1x192x128xbf16>
    %84 = vector.shape_cast %83 : vector<1x192x128xbf16> to vector<192x128xbf16>
    %cst_54 = arith.constant dense<0.000000e+00> : vector<8x128xf32>
    %85 = tpu.matmul %82, %84, %cst_54 {dimension_numbers = #tpu.dot_dimension_numbers<[1], [0], [0], [1], [0, 0, 1, 1], [], []>} : vector<8x192xbf16>, vector<192x128xbf16>, vector<8x128xf32> -> vector<8x128xf32>
    %86 = arith.addf %80, %85 : vector<8x128xf32>
    %87 = vector.extract_strided_slice %43 {offsets = [56, 0], sizes = [8, 192], strides = [1, 1]} : vector<96x192xf32> to vector<8x192xf32>
    %88 = arith.truncf %87 : vector<8x192xf32> to vector<8x192xbf16>
    %c7 = arith.constant 7 : index
    %c0_55 = arith.constant 0 : index
    %c0_56 = arith.constant 0 : index
    %89 = vector.load %arg6[%c7, %c0_55, %c0_56] : memref<12x192x128xbf16, #tpu.memory_space<vmem>>, vector<1x192x128xbf16>
    %90 = vector.shape_cast %89 : vector<1x192x128xbf16> to vector<192x128xbf16>
    %cst_57 = arith.constant dense<0.000000e+00> : vector<8x128xf32>
    %91 = tpu.matmul %88, %90, %cst_57 {dimension_numbers = #tpu.dot_dimension_numbers<[1], [0], [0], [1], [0, 0, 1, 1], [], []>} : vector<8x192xbf16>, vector<192x128xbf16>, vector<8x128xf32> -> vector<8x128xf32>
    %92 = arith.addf %86, %91 : vector<8x128xf32>
    %93 = vector.extract_strided_slice %43 {offsets = [64, 0], sizes = [8, 192], strides = [1, 1]} : vector<96x192xf32> to vector<8x192xf32>
    %94 = arith.truncf %93 : vector<8x192xf32> to vector<8x192xbf16>
    %c8_58 = arith.constant 8 : index
    %c0_59 = arith.constant 0 : index
    %c0_60 = arith.constant 0 : index
    %95 = vector.load %arg6[%c8_58, %c0_59, %c0_60] : memref<12x192x128xbf16, #tpu.memory_space<vmem>>, vector<1x192x128xbf16>
    %96 = vector.shape_cast %95 : vector<1x192x128xbf16> to vector<192x128xbf16>
    %cst_61 = arith.constant dense<0.000000e+00> : vector<8x128xf32>
    %97 = tpu.matmul %94, %96, %cst_61 {dimension_numbers = #tpu.dot_dimension_numbers<[1], [0], [0], [1], [0, 0, 1, 1], [], []>} : vector<8x192xbf16>, vector<192x128xbf16>, vector<8x128xf32> -> vector<8x128xf32>
    %98 = arith.addf %92, %97 : vector<8x128xf32>
    %99 = vector.extract_strided_slice %43 {offsets = [72, 0], sizes = [8, 192], strides = [1, 1]} : vector<96x192xf32> to vector<8x192xf32>
    %100 = arith.truncf %99 : vector<8x192xf32> to vector<8x192xbf16>
    %c9 = arith.constant 9 : index
    %c0_62 = arith.constant 0 : index
    %c0_63 = arith.constant 0 : index
    %101 = vector.load %arg6[%c9, %c0_62, %c0_63] : memref<12x192x128xbf16, #tpu.memory_space<vmem>>, vector<1x192x128xbf16>
    %102 = vector.shape_cast %101 : vector<1x192x128xbf16> to vector<192x128xbf16>
    %cst_64 = arith.constant dense<0.000000e+00> : vector<8x128xf32>
    %103 = tpu.matmul %100, %102, %cst_64 {dimension_numbers = #tpu.dot_dimension_numbers<[1], [0], [0], [1], [0, 0, 1, 1], [], []>} : vector<8x192xbf16>, vector<192x128xbf16>, vector<8x128xf32> -> vector<8x128xf32>
    %104 = arith.addf %98, %103 : vector<8x128xf32>
    %105 = vector.extract_strided_slice %43 {offsets = [80, 0], sizes = [8, 192], strides = [1, 1]} : vector<96x192xf32> to vector<8x192xf32>
    %106 = arith.truncf %105 : vector<8x192xf32> to vector<8x192xbf16>
    %c10 = arith.constant 10 : index
    %c0_65 = arith.constant 0 : index
    %c0_66 = arith.constant 0 : index
    %107 = vector.load %arg6[%c10, %c0_65, %c0_66] : memref<12x192x128xbf16, #tpu.memory_space<vmem>>, vector<1x192x128xbf16>
    %108 = vector.shape_cast %107 : vector<1x192x128xbf16> to vector<192x128xbf16>
    %cst_67 = arith.constant dense<0.000000e+00> : vector<8x128xf32>
    %109 = tpu.matmul %106, %108, %cst_67 {dimension_numbers = #tpu.dot_dimension_numbers<[1], [0], [0], [1], [0, 0, 1, 1], [], []>} : vector<8x192xbf16>, vector<192x128xbf16>, vector<8x128xf32> -> vector<8x128xf32>
    %110 = arith.addf %104, %109 : vector<8x128xf32>
    %111 = vector.extract_strided_slice %43 {offsets = [88, 0], sizes = [8, 192], strides = [1, 1]} : vector<96x192xf32> to vector<8x192xf32>
    %112 = arith.truncf %111 : vector<8x192xf32> to vector<8x192xbf16>
    %c11 = arith.constant 11 : index
    %c0_68 = arith.constant 0 : index
    %c0_69 = arith.constant 0 : index
    %113 = vector.load %arg6[%c11, %c0_68, %c0_69] : memref<12x192x128xbf16, #tpu.memory_space<vmem>>, vector<1x192x128xbf16>
    %114 = vector.shape_cast %113 : vector<1x192x128xbf16> to vector<192x128xbf16>
    %cst_70 = arith.constant dense<0.000000e+00> : vector<8x128xf32>
    %115 = tpu.matmul %112, %114, %cst_70 {dimension_numbers = #tpu.dot_dimension_numbers<[1], [0], [0], [1], [0, 0, 1, 1], [], []>} : vector<8x192xbf16>, vector<192x128xbf16>, vector<8x128xf32> -> vector<8x128xf32>
    %116 = arith.addf %110, %115 : vector<8x128xf32>
    %c0_71 = arith.constant 0 : index
    %c0_72 = arith.constant 0 : index
    %117 = vector.load %arg7[%c0_71, %c0_72] : memref<1x128xf32, #tpu.memory_space<vmem>>, vector<1x128xf32>
    %118 = vector.broadcast %117 : vector<1x128xf32> to vector<8x128xf32>
    %119 = arith.addf %116, %118 : vector<8x128xf32>
    %c0_73 = arith.constant 0 : index
    %c0_74 = arith.constant 0 : index
    %120 = vector.load %arg8[%c0_73, %c0_74] : memref<8x128xf32, #tpu.memory_space<vmem>>, vector<8x128xf32>
    tpu.vector_store %arg8[%c0_73, %c0_74], %119 {strides = array<i32>} : memref<8x128xf32, #tpu.memory_space<vmem>>, vector<8x128xf32>,
    return
  }
  func.func @transform_0(%arg0: i32) -> (i32, i32) {
    %c0_i32 = arith.constant 0 : i32
    %c0_i32_0 = arith.constant 0 : i32
    return %arg0, %c0_i32 : i32, i32
  }
  func.func @transform_1(%arg0: i32) -> (i32, i32, i32) {
    %c0_i32 = arith.constant 0 : i32
    %c0_i32_0 = arith.constant 0 : i32
    %c0_i32_1 = arith.constant 0 : i32
    %c0_i32_2 = arith.constant 0 : i32
    return %c0_i32, %c0_i32_0, %c0_i32_1 : i32, i32, i32
  }
  func.func @transform_2(%arg0: i32) -> (i32, i32) {
    %c0_i32 = arith.constant 0 : i32
    %c0_i32_0 = arith.constant 0 : i32
    %c0_i32_1 = arith.constant 0 : i32
    return %c0_i32, %c0_i32_0 : i32, i32
  }
  func.func @transform_3(%arg0: i32) -> (i32, i32, i32) {
    %c0_i32 = arith.constant 0 : i32
    %c0_i32_0 = arith.constant 0 : i32
    %c0_i32_1 = arith.constant 0 : i32
    %c0_i32_2 = arith.constant 0 : i32
    return %c0_i32, %c0_i32_0, %c0_i32_1 : i32, i32, i32
  }
  func.func @transform_4(%arg0: i32) -> (i32, i32) {
    %c0_i32 = arith.constant 0 : i32
    %c0_i32_0 = arith.constant 0 : i32
    %c0_i32_1 = arith.constant 0 : i32
    return %c0_i32, %c0_i32_0 : i32, i32
  }
  func.func @transform_5(%arg0: i32) -> (i32, i32, i32) {
    %c0_i32 = arith.constant 0 : i32
    %c0_i32_0 = arith.constant 0 : i32
    %c0_i32_1 = arith.constant 0 : i32
    %c0_i32_2 = arith.constant 0 : i32
    return %c0_i32, %c0_i32_0, %c0_i32_1 : i32, i32, i32
  }
  func.func @transform_6(%arg0: i32) -> (i32, i32) {
    %c0_i32 = arith.constant 0 : i32
    %c0_i32_0 = arith.constant 0 : i32
    %c0_i32_1 = arith.constant 0 : i32
    return %c0_i32, %c0_i32_0 : i32, i32
  }
  func.func @transform_7(%arg0: i32) -> (i32, i32) {
    %c0_i32 = arith.constant 0 : i32
    %c0_i32_0 = arith.constant 0 : i32
    return %arg0, %c0_i32 : i32, i32
  }
}

</mosaic_0001>

<llo_original>
// kernel: image_classifier_forward.1
$region0: #{image_classifier_forward.1}
  #allocation0 [shape = 'u32[]', space=smem, size = 0x4, offset = 0x4, fixed_abs, tag = 'smem constant byte address 0x4 - core index']
  #allocation1 [shape = 'u32[144,128]{1,0:T(1,128)}', space=vmem, size = 0x12000, scoped, tag = 'internal scratch']
  %s0 = inlined_call_operand.vmem [shape: f32[128,16], index: 0, kind: input, shape index: {}]
  %s1 = inlined_call_operand.vmem [shape: bf16[3,16,112], index: 1, kind: input, shape index: {}]
  %s2 = inlined_call_operand.vmem [shape: f32[1,112], index: 2, kind: input, shape index: {}]
  %s3 = inlined_call_operand.vmem [shape: bf16[3,112,192], index: 3, kind: input, shape index: {}]
  %s4 = inlined_call_operand.vmem [shape: f32[1,192], index: 4, kind: input, shape index: {}]
  %s5 = inlined_call_operand.hbm [shape: bf16[12,192,128], index: 5, kind: input, shape index: {}]
  %s6 = inlined_call_operand.vmem [shape: f32[1,128], index: 6, kind: input, shape index: {}]
  %s7 = inlined_call_operand.vmem [shape: f32[8,128], index: 7, kind: output, shape index: {}]
  %s8 = sld [smem:[#allocation0]]
  $region42: #{image_classifier_forward.1} parent=0
    _
  %s10 = ssub.s32 1, %s8
  %s11 = scalar_select 0, %s10, %s8
  $region1: #{image_classifier_forward.1} parent=0
    #allocation2 [shape = 'u8[589824]{0}', space=vmem, size = 0x90000, scoped, tag = 'input window, operand 5, single buffered']
    #allocation3 [shape = 's32[1]{0}', space=sflag, size = 0x4, scoped, tag = 'scoped memory for image_classifier_forward.1']
    %12 = vsyncpa [#allocation3], 0
    // Predicated region
    $region2: #{image_classifier_forward.1} parent=1 // pred_check
      _
    $region3: #{image_classifier_forward.1} parent=1 // pred_check_branch
      %14 = sbr.rel (0) target = $region5
    $region4: #{image_classifier_forward.1} parent=1 // pred_region
      _
    $region5: #{image_classifier_forward.1} parent=1 // pred_fallthru
      _
    // Predicated region
    $region6: #{image_classifier_forward.1} parent=1 // pred_check
      _
    $region7: #{image_classifier_forward.1} parent=1 // pred_check_branch
      %16 = sbr.rel (0) target = $region9
    $region8: #{image_classifier_forward.1} parent=1 // pred_region
      _
    $region9: #{image_classifier_forward.1} parent=1 // pred_fallthru
      _
    // Predicated region
    $region10: #{image_classifier_forward.1} parent=1 // pred_check
      _
    $region11: #{image_classifier_forward.1} parent=1 // pred_check_branch
      %18 = sbr.rel (0) target = $region13
    $region12: #{image_classifier_forward.1} parent=1 // pred_region
      _
    $region13: #{image_classifier_forward.1} parent=1 // pred_fallthru
      _
    // Predicated region
    $region14: #{image_classifier_forward.1} parent=1 // pred_check
      _
    $region15: #{image_classifier_forward.1} parent=1 // pred_check_branch
      %20 = sbr.rel (0) target = $region17
    $region16: #{image_classifier_forward.1} parent=1 // pred_region
      _
    $region17: #{image_classifier_forward.1} parent=1 // pred_fallthru
      _
    // Predicated region
    $region18: #{image_classifier_forward.1} parent=1 // pred_check
      _
    $region19: #{image_classifier_forward.1} parent=1 // pred_check_branch
      %22 = sbr.rel (0) target = $region21
    $region20: #{image_classifier_forward.1} parent=1 // pred_region
      _
    $region21: #{image_classifier_forward.1} parent=1 // pred_fallthru
      _
    // Predicated region
    $region22: #{image_classifier_forward.1} parent=1 // pred_check
      _
    $region23: #{image_classifier_forward.1} parent=1 // pred_check_branch
      %24 = sbr.rel (0) target = $region25
    $region24: #{image_classifier_forward.1} parent=1 // pred_region
      %s26 = ssub.s32 18432, 18432
      %27 = vsyncadd [#allocation3], %s26
      %s28 = sshll.u32 [#allocation2], 4
      %s29 = int_to_ptr.vmem [resolvable:$true] %s28
      %34 = dma.hbm_to_vmem [thread:$0]  %s5, 18432, %s29, [#allocation3], 64, 64, 4
    $region25: #{image_classifier_forward.1} parent=1 // pred_fallthru
      _
    // Predicated region
    $region26: #{image_classifier_forward.1} parent=1 // pred_check
      _
    $region27: #{image_classifier_forward.1} parent=1 // pred_check_branch
      %36 = sbr.rel (0) target = $region29
    $region28: #{image_classifier_forward.1} parent=1 // pred_region
      _
    $region29: #{image_classifier_forward.1} parent=1 // pred_fallthru
      _
    // Predicated region
    $region30: #{image_classifier_forward.1} parent=1 // pred_check
      _
    $region31: #{image_classifier_forward.1} parent=1 // pred_check_branch
      %38 = sbr.rel (0) target = $region33
    $region32: #{image_classifier_forward.1} parent=1 // pred_region
      %39 = dma.done [#allocation3], 18432
    $region33: #{image_classifier_forward.1} parent=1 // pred_fallthru
      _
    %v41 = vld [vmem:[%s0] sm:$0xff]
    %v42 = vld [vmem:[%s0 + $0x8] sm:$0xff]
    %v43 = vld [vmem:[%s0 + $0x10] sm:$0xff]
    %v44 = vld [vmem:[%s0 + $0x18] sm:$0xff]
    %v45 = vld [vmem:[%s0 + $0x20] sm:$0xff]
    %v46 = vld [vmem:[%s0 + $0x28] sm:$0xff]
    %v47 = vld [vmem:[%s0 + $0x30] sm:$0xff]
    %v48 = vld [vmem:[%s0 + $0x38] sm:$0xff]
    %v49 = vld [vmem:[%s0 + $0x40] sm:$0xff]
    %v50 = vld [vmem:[%s0 + $0x48] sm:$0xff]
    %v51 = vld [vmem:[%s0 + $0x50] sm:$0xff]
    %v52 = vld [vmem:[%s0 + $0x58] sm:$0xff]
    %v53 = vld [vmem:[%s0 + $0x60] sm:$0xff]
    %v54 = vld [vmem:[%s0 + $0x68] sm:$0xff]
    %v55 = vpack.c.bf16 %v42, %v41
    %v56 = vpack.c.bf16 %v44, %v43
    %v57 = vpack.c.bf16 %v46, %v45
    %v58 = vpack.c.bf16 %v48, %v47
    %v59 = vpack.c.bf16 %v50, %v49
    %v60 = vpack.c.bf16 %v52, %v51
    %v61 = vpack.c.bf16 %v54, %v53
    %v62 = vld [vmem:[%s1] sm:$0xf]
    %v63 = vld [vmem:[%s1 + $0x4] sm:$0xf]
    %v64 = vld [vmem:[%s0 + $0x70] sm:$0xff]
    %v65 = vpack.c.bf16 %v43, %v42
    %v66 = vpack.c.bf16 %v45, %v44
    %v67 = vpack.c.bf16 %v47, %v46
    %v68 = vpack.c.bf16 %v49, %v48
    %v69 = vpack.c.bf16 %v51, %v50
    %v70 = vpack.c.bf16 %v53, %v52
    %v71 = vpack.c.bf16 %v64, %v54
    %s72 = scalar_lea.vmem %s1, 8
    %v73 = vld [vmem:[%s72] sm:$0xf]
    %v74 = vld [vmem:[%s72 + $0x4] sm:$0xf]
    %v77 = vunpack.c.l.b16 %v73
    %v78 = vunpack.c.l.b16 %v74
    %v79 = vpack.c.b16 %v78, %v77
    %vm81 = vcmask 130048
    %v83 = vsel %vm81, %v65, 0
    %v86 = vsel %vm81, %v66, 0
    %v89 = vsel %vm81, %v67, 0
    %v92 = vsel %vm81, %v68, 0
    %v95 = vsel %vm81, %v69, 0
    %v98 = vsel %vm81, %v70, 0
    %v101 = vsel %vm81, %v71, 0
    %103 = vmatprep.subr.bf16.mxu0 0
    %104 = vmatpush1.bf16.msra.mxu0 %v79
    %105 = vmatprep.subr.bf16.mxu0 0
    %106 = vmatpush1.bf16.msra.mxu0 0
    %107 = vmatprep.subr.bf16.mxu0 0
    %108 = vmatpush1.bf16.msra.mxu0 0
    %109 = vmatprep.subr.bf16.mxu0 0
    %110 = vmatpush1.bf16.msra.mxu0 0
    %111 = vmatprep.subr.bf16.mxu0 0
    %112 = vmatpush1.bf16.msra.mxu0 0
    %113 = vmatprep.subr.bf16.mxu0 0
    %114 = vmatpush1.bf16.msra.mxu0 0
    %115 = vmatprep.subr.bf16.mxu0 0
    %116 = vmatpush1.bf16.msra.mxu0 0
    %117 = vmatprep.subr.bf16.mxu0 0
    %118 = vmatpush1.bf16.msra.mxu0 0
    %119 = vmatprep.subr.bf16.mxu0 0
    %120 = vmatpush1.bf16.msra.mxu0 0
    %121 = vmatprep.subr.bf16.mxu0 0
    %122 = vmatpush1.bf16.msra.mxu0 0
    %123 = vmatprep.subr.bf16.mxu0 0
    %124 = vmatpush1.bf16.msra.mxu0 0
    %125 = vmatprep.subr.bf16.mxu0 0
    %126 = vmatpush1.bf16.msra.mxu0 0
    %127 = vmatprep.subr.bf16.mxu0 0
    %128 = vmatpush1.bf16.msra.mxu0 0
    %129 = vmatprep.subr.bf16.mxu0 0
    %130 = vmatpush1.bf16.msra.mxu0 0
    %131 = vmatprep.subr.bf16.mxu0 0
    %132 = vmatpush1.bf16.msra.mxu0 0
    %133 = vmatprep.subr.bf16.mxu0 0
    %134 = vmatpush1.bf16.msra.mxu0 0
    %135 = vmatprep.mubr.bf16.mxu0 0
    %136 = vmatmul.mubr.bf16.gmra.mrb[0].mxu0 %v83
    %v137 = vpop.f32.mrb[0].mxu0
    %v138 = vadd.f32 0.0, %v137
    %v139 = vpop.f32.mrb[0].mxu0
    %v140 = vpop.f32.mrb[0].mxu0
    %v141 = vadd.f32 0.0, %v140
    %v142 = vpop.f32.mrb[0].mxu0
    %143 = vmatprep.mubr.bf16.mxu0 0
    %144 = vmatmul.mubr.bf16.gmra.mrb[0].mxu0 %v86
    %v145 = vpop.f32.mrb[0].mxu0
    %v146 = vadd.f32 0.0, %v145
    %v147 = vpop.f32.mrb[0].mxu0
    %v148 = vpop.f32.mrb[0].mxu0
    %v149 = vadd.f32 0.0, %v148
    %v150 = vpop.f32.mrb[0].mxu0
    %151 = vmatprep.mubr.bf16.mxu0 0
    %152 = vmatmul.mubr.bf16.gmra.mrb[0].mxu0 %v89
    %v153 = vpop.f32.mrb[0].mxu0
    %v154 = vadd.f32 0.0, %v153
    %v155 = vpop.f32.mrb[0].mxu0
    %v156 = vpop.f32.mrb[0].mxu0
    %v157 = vadd.f32 0.0, %v156
    %v158 = vpop.f32.mrb[0].mxu0
    %159 = vmatprep.mubr.bf16.mxu0 0
    %160 = vmatmul.mubr.bf16.gmra.mrb[0].mxu0 %v92
    %v161 = vpop.f32.mrb[0].mxu0
    %v162 = vadd.f32 0.0, %v161
    %v163 = vpop.f32.mrb[0].mxu0
    %v164 = vpop.f32.mrb[0].mxu0
    %v165 = vadd.f32 0.0, %v164
    %v166 = vpop.f32.mrb[0].mxu0
    %167 = vmatprep.mubr.bf16.mxu0 0
    %168 = vmatmul.mubr.bf16.gmra.mrb[0].mxu0 %v95
    %v169 = vpop.f32.mrb[0].mxu0
    %v170 = vadd.f32 0.0, %v169
    %v171 = vpop.f32.mrb[0].mxu0
    %v172 = vpop.f32.mrb[0].mxu0
    %v173 = vadd.f32 0.0, %v172
    %v174 = vpop.f32.mrb[0].mxu0
    %175 = vmatprep.mubr.bf16.mxu0 0
    %176 = vmatmul.mubr.bf16.gmra.mrb[0].mxu0 %v98
    %v177 = vpop.f32.mrb[0].mxu0
    %v178 = vadd.f32 0.0, %v177
    %v179 = vpop.f32.mrb[0].mxu0
    %v180 = vpop.f32.mrb[0].mxu0
    %v181 = vadd.f32 0.0, %v180
    %v182 = vpop.f32.mrb[0].mxu0
    %183 = vmatprep.mubr.bf16.mxu0 0
    %184 = vmatmul.mubr.bf16.gmra.mrb[0].mxu0 %v101
    %v185 = vpop.f32.mrb[0].mxu0
    %v186 = vadd.f32 0.0, %v185
    %v187 = vpop.f32.mrb[0].mxu0
    %v188 = vpop.f32.mrb[0].mxu0
    %v189 = vadd.f32 0.0, %v188
    %v190 = vpop.f32.mrb[0].mxu0
    %191 = vdwg.mxu0
    %v194 = vunpack.c.l.b16 %v62
    %v195 = vunpack.c.l.b16 %v63
    %v196 = vpack.c.b16 %v195, %v194
    %v199 = vsel %vm81, %v55, 0
    %v202 = vsel %vm81, %v56, 0
    %v205 = vsel %vm81, %v57, 0
    %v208 = vsel %vm81, %v58, 0
    %v211 = vsel %vm81, %v59, 0
    %v214 = vsel %vm81, %v60, 0
    %v217 = vsel %vm81, %v61, 0
    %219 = vmatprep.subr.bf16.mxu0 0
    %220 = vmatpush1.bf16.msra.mxu0 %v196
    %221 = vmatprep.subr.bf16.mxu0 0
    %222 = vmatpush1.bf16.msra.mxu0 0
    %223 = vmatprep.subr.bf16.mxu0 0
    %224 = vmatpush1.bf16.msra.mxu0 0
    %225 = vmatprep.subr.bf16.mxu0 0
    %226 = vmatpush1.bf16.msra.mxu0 0
    %227 = vmatprep.subr.bf16.mxu0 0
    %228 = vmatpush1.bf16.msra.mxu0 0
    %229 = vmatprep.subr.bf16.mxu0 0
    %230 = vmatpush1.bf16.msra.mxu0 0
    %231 = vmatprep.subr.bf16.mxu0 0
    %232 = vmatpush1.bf16.msra.mxu0 0
    %233 = vmatprep.subr.bf16.mxu0 0
    %234 = vmatpush1.bf16.msra.mxu0 0
    %235 = vmatprep.subr.bf16.mxu0 0
    %236 = vmatpush1.bf16.msra.mxu0 0
    %237 = vmatprep.subr.bf16.mxu0 0
    %238 = vmatpush1.bf16.msra.mxu0 0
    %239 = vmatprep.subr.bf16.mxu0 0
    %240 = vmatpush1.bf16.msra.mxu0 0
    %241 = vmatprep.subr.bf16.mxu0 0
    %242 = vmatpush1.bf16.msra.mxu0 0
    %243 = vmatprep.subr.bf16.mxu0 0
    %244 = vmatpush1.bf16.msra.mxu0 0
    %245 = vmatprep.subr.bf16.mxu0 0
    %246 = vmatpush1.bf16.msra.mxu0 0
    %247 = vmatprep.subr.bf16.mxu0 0
    %248 = vmatpush1.bf16.msra.mxu0 0
    %249 = vmatprep.subr.bf16.mxu0 0
    %250 = vmatpush1.bf16.msra.mxu0 0
    %251 = vmatprep.mubr.bf16.mxu0 0
    %252 = vmatmul.mubr.bf16.gmra.mrb[0].mxu0 %v199
    %v253 = vpop.f32.mrb[0].mxu0
    %v254 = vadd.f32 %v138, %v253
    %v255 = vpop.f32.mrb[0].mxu0
    %v256 = vpop.f32.mrb[0].mxu0
    %v257 = vadd.f32 %v141, %v256
    %v258 = vpop.f32.mrb[0].mxu0
    %259 = vmatprep.mubr.bf16.mxu0 0
    %260 = vmatmul.mubr.bf16.gmra.mrb[0].mxu0 %v202
    %v261 = vpop.f32.mrb[0].mxu0
    %v262 = vadd.f32 %v146, %v261
    %v263 = vpop.f32.mrb[0].mxu0
    %v264 = vpop.f32.mrb[0].mxu0
    %v265 = vadd.f32 %v149, %v264
    %v266 = vpop.f32.mrb[0].mxu0
    %267 = vmatprep.mubr.bf16.mxu0 0
    %268 = vmatmul.mubr.bf16.gmra.mrb[0].mxu0 %v205
    %v269 = vpop.f32.mrb[0].mxu0
    %v270 = vadd.f32 %v154, %v269
    %v271 = vpop.f32.mrb[0].mxu0
    %v272 = vpop.f32.mrb[0].mxu0
    %v273 = vadd.f32 %v157, %v272
    %v274 = vpop.f32.mrb[0].mxu0
    %275 = vmatprep.mubr.bf16.mxu0 0
    %276 = vmatmul.mubr.bf16.gmra.mrb[0].mxu0 %v208
    %v277 = vpop.f32.mrb[0].mxu0
    %v278 = vadd.f32 %v162, %v277
    %v279 = vpop.f32.mrb[0].mxu0
    %v280 = vpop.f32.mrb[0].mxu0
    %v281 = vadd.f32 %v165, %v280
    %v282 = vpop.f32.mrb[0].mxu0
    %283 = vmatprep.mubr.bf16.mxu0 0
    %284 = vmatmul.mubr.bf16.gmra.mrb[0].mxu0 %v211
    %v285 = vpop.f32.mrb[0].mxu0
    %v286 = vadd.f32 %v170, %v285
    %v287 = vpop.f32.mrb[0].mxu0
    %v288 = vpop.f32.mrb[0].mxu0
    %v289 = vadd.f32 %v173, %v288
    %v290 = vpop.f32.mrb[0].mxu0
    %291 = vmatprep.mubr.bf16.mxu0 0
    %292 = vmatmul.mubr.bf16.gmra.mrb[0].mxu0 %v214
    %v293 = vpop.f32.mrb[0].mxu0
    %v294 = vadd.f32 %v178, %v293
    %v295 = vpop.f32.mrb[0].mxu0
    %v296 = vpop.f32.mrb[0].mxu0
    %v297 = vadd.f32 %v181, %v296
    %v298 = vpop.f32.mrb[0].mxu0
    %299 = vmatprep.mubr.bf16.mxu0 0
    %300 = vmatmul.mubr.bf16.gmra.mrb[0].mxu0 %v217
    %v301 = vpop.f32.mrb[0].mxu0
    %v302 = vadd.f32 %v186, %v301
    %v303 = vpop.f32.mrb[0].mxu0
    %v304 = vpop.f32.mrb[0].mxu0
    %v305 = vadd.f32 %v189, %v304
    %v306 = vpop.f32.mrb[0].mxu0
    %307 = vdwg.mxu0
    %v308 = vld [vmem:[%s0 + $0x10] sm:$0xff]
    %v309 = vld [vmem:[%s0 + $0x18] sm:$0xff]
    %v310 = vld [vmem:[%s0 + $0x20] sm:$0xff]
    %v311 = vld [vmem:[%s0 + $0x28] sm:$0xff]
    %v312 = vld [vmem:[%s0 + $0x30] sm:$0xff]
    %v313 = vld [vmem:[%s0 + $0x38] sm:$0xff]
    %v314 = vld [vmem:[%s0 + $0x40] sm:$0xff]
    %v315 = vld [vmem:[%s0 + $0x48] sm:$0xff]
    %v316 = vld [vmem:[%s0 + $0x50] sm:$0xff]
    %v317 = vld [vmem:[%s0 + $0x58] sm:$0xff]
    %v318 = vld [vmem:[%s0 + $0x60] sm:$0xff]
    %v319 = vld [vmem:[%s0 + $0x68] sm:$0xff]
    %v320 = vld [vmem:[%s0 + $0x70] sm:$0xff]
    %v321 = vld [vmem:[%s0 + $0x78] sm:$0xff]
    %v322 = vpack.c.bf16 %v309, %v308
    %v323 = vpack.c.bf16 %v311, %v310
    %v324 = vpack.c.bf16 %v313, %v312
    %v325 = vpack.c.bf16 %v315, %v314
    %v326 = vpack.c.bf16 %v317, %v316
    %v327 = vpack.c.bf16 %v319, %v318
    %v328 = vpack.c.bf16 %v321, %v320
    %s329 = scalar_lea.vmem %s1, 16
    %v330 = vld [vmem:[%s329] sm:$0xf]
    %v331 = vld [vmem:[%s329 + $0x4] sm:$0xf]
    %v334 = vunpack.c.l.b16 %v330
    %v335 = vunpack.c.l.b16 %v331
    %v336 = vpack.c.b16 %v335, %v334
    %v339 = vsel %vm81, %v322, 0
    %v342 = vsel %vm81, %v323, 0
    %v345 = vsel %vm81, %v324, 0
    %v348 = vsel %vm81, %v325, 0
    %v351 = vsel %vm81, %v326, 0
    %v354 = vsel %vm81, %v327, 0
    %v357 = vsel %vm81, %v328, 0
    %359 = vmatprep.subr.bf16.mxu0 0
    %360 = vmatpush1.bf16.msra.mxu0 %v336
    %361 = vmatprep.subr.bf16.mxu0 0
    %362 = vmatpush1.bf16.msra.mxu0 0
    %363 = vmatprep.subr.bf16.mxu0 0
    %364 = vmatpush1.bf16.msra.mxu0 0
    %365 = vmatprep.subr.bf16.mxu0 0
    %366 = vmatpush1.bf16.msra.mxu0 0
    %367 = vmatprep.subr.bf16.mxu0 0
    %368 = vmatpush1.bf16.msra.mxu0 0
    %369 = vmatprep.subr.bf16.mxu0 0
    %370 = vmatpush1.bf16.msra.mxu0 0
    %371 = vmatprep.subr.bf16.mxu0 0
    %372 = vmatpush1.bf16.msra.mxu0 0
    %373 = vmatprep.subr.bf16.mxu0 0
    %374 = vmatpush1.bf16.msra.mxu0 0
    %375 = vmatprep.subr.bf16.mxu0 0
    %376 = vmatpush1.bf16.msra.mxu0 0
    %377 = vmatprep.subr.bf16.mxu0 0
    %378 = vmatpush1.bf16.msra.mxu0 0
    %379 = vmatprep.subr.bf16.mxu0 0
    %380 = vmatpush1.bf16.msra.mxu0 0
    %381 = vmatprep.subr.bf16.mxu0 0
    %382 = vmatpush1.bf16.msra.mxu0 0
    %383 = vmatprep.subr.bf16.mxu0 0
    %384 = vmatpush1.bf16.msra.mxu0 0
    %385 = vmatprep.subr.bf16.mxu0 0
    %386 = vmatpush1.bf16.msra.mxu0 0
    %387 = vmatprep.subr.bf16.mxu0 0
    %388 = vmatpush1.bf16.msra.mxu0 0
    %389 = vmatprep.subr.bf16.mxu0 0
    %390 = vmatpush1.bf16.msra.mxu0 0
    %391 = vmatprep.mubr.bf16.mxu0 0
    %392 = vmatmul.mubr.bf16.gmra.mrb[0].mxu0 %v339
    %v393 = vpop.f32.mrb[0].mxu0
    %v394 = vadd.f32 0.0, %v393
    %v395 = vpop.f32.mrb[0].mxu0
    %v396 = vpop.f32.mrb[0].mxu0
    %v397 = vadd.f32 0.0, %v396
    %v398 = vpop.f32.mrb[0].mxu0
    %399 = vmatprep.mubr.bf16.mxu0 0
    %400 = vmatmul.mubr.bf16.gmra.mrb[0].mxu0 %v342
    %v401 = vpop.f32.mrb[0].mxu0
    %v402 = vadd.f32 0.0, %v401
    %v403 = vpop.f32.mrb[0].mxu0
    %v404 = vpop.f32.mrb[0].mxu0
    %v405 = vadd.f32 0.0, %v404
    %v406 = vpop.f32.mrb[0].mxu0
    %407 = vmatprep.mubr.bf16.mxu0 0
    %408 = vmatmul.mubr.bf16.gmra.mrb[0].mxu0 %v345
    %v409 = vpop.f32.mrb[0].mxu0
    %v410 = vadd.f32 0.0, %v409
    %v411 = vpop.f32.mrb[0].mxu0
    %v412 = vpop.f32.mrb[0].mxu0
    %v413 = vadd.f32 0.0, %v412
    %v414 = vpop.f32.mrb[0].mxu0
    %415 = vmatprep.mubr.bf16.mxu0 0
    %416 = vmatmul.mubr.bf16.gmra.mrb[0].mxu0 %v348
    %v417 = vpop.f32.mrb[0].mxu0
    %v418 = vadd.f32 0.0, %v417
    %v419 = vpop.f32.mrb[0].mxu0
    %v420 = vpop.f32.mrb[0].mxu0
    %v421 = vadd.f32 0.0, %v420
    %v422 = vpop.f32.mrb[0].mxu0
    %423 = vmatprep.mubr.bf16.mxu0 0
    %424 = vmatmul.mubr.bf16.gmra.mrb[0].mxu0 %v351
    %v425 = vpop.f32.mrb[0].mxu0
    %v426 = vadd.f32 0.0, %v425
    %v427 = vpop.f32.mrb[0].mxu0
    %v428 = vpop.f32.mrb[0].mxu0
    %v429 = vadd.f32 0.0, %v428
    %v430 = vpop.f32.mrb[0].mxu0
    %431 = vmatprep.mubr.bf16.mxu0 0
    %432 = vmatmul.mubr.bf16.gmra.mrb[0].mxu0 %v354
    %v433 = vpop.f32.mrb[0].mxu0
    %v434 = vadd.f32 0.0, %v433
    %v435 = vpop.f32.mrb[0].mxu0
    %v436 = vpop.f32.mrb[0].mxu0
    %v437 = vadd.f32 0.0, %v436
    %v438 = vpop.f32.mrb[0].mxu0
    %439 = vmatprep.mubr.bf16.mxu0 0
    %440 = vmatmul.mubr.bf16.gmra.mrb[0].mxu0 %v357
    %v441 = vpop.f32.mrb[0].mxu0
    %v442 = vadd.f32 0.0, %v441
    %v443 = vpop.f32.mrb[0].mxu0
    %v444 = vpop.f32.mrb[0].mxu0
    %v445 = vadd.f32 0.0, %v444
    %v446 = vpop.f32.mrb[0].mxu0
    %447 = vdwg.mxu0
    %v448 = vadd.f32 %v254, %v394
    %v449 = vadd.f32 %v257, %v397
    %v450 = vadd.f32 %v262, %v402
    %v451 = vadd.f32 %v265, %v405
    %v452 = vadd.f32 %v270, %v410
    %v453 = vadd.f32 %v273, %v413
    %v454 = vadd.f32 %v278, %v418
    %v455 = vadd.f32 %v281, %v421
    %v456 = vadd.f32 %v286, %v426
    %v457 = vadd.f32 %v289, %v429
    %v458 = vadd.f32 %v294, %v434
    %v459 = vadd.f32 %v297, %v437
    %v460 = vadd.f32 %v302, %v442
    %v461 = vadd.f32 %v305, %v445
    %v462 = vld [vmem:[%s2] sm:$0x1]
    %v464 = vlaneseq
    %v465 = vshrl.u32 %v464, 7
    %v466 = vsub.s32 0, %v465
    %v467 = vrot.slane %v462, %v466
    %v469 = vadd.f32 %v448, %v467
    %v470 = vadd.f32 %v449, %v467
    %v471 = vadd.f32 %v450, %v467
    %v472 = vadd.f32 %v451, %v467
    %v473 = vadd.f32 %v452, %v467
    %v474 = vadd.f32 %v453, %v467
    %v475 = vadd.f32 %v454, %v467
    %v476 = vadd.f32 %v455, %v467
    %v477 = vadd.f32 %v456, %v467
    %v478 = vadd.f32 %v457, %v467
    %v479 = vadd.f32 %v458, %v467
    %v480 = vadd.f32 %v459, %v467
    %v481 = vadd.f32 %v460, %v467
    %v482 = vadd.f32 %v461, %v467
    %v483 = vmax.f32 %v469, 0.0
    %v484 = vmax.f32 %v470, 0.0
    %v485 = vmax.f32 %v471, 0.0
    %v486 = vmax.f32 %v472, 0.0
    %v487 = vmax.f32 %v473, 0.0
    %v488 = vmax.f32 %v474, 0.0
    %v489 = vmax.f32 %v475, 0.0
    %v490 = vmax.f32 %v476, 0.0
    %v491 = vmax.f32 %v477, 0.0
    %v492 = vmax.f32 %v478, 0.0
    %v493 = vmax.f32 %v479, 0.0
    %v494 = vmax.f32 %v480, 0.0
    %v495 = vmax.f32 %v481, 0.0
    %v496 = vmax.f32 %v482, 0.0
    %v497 = vpack.c.bf16 %v484, %v483
    %v498 = vpack.c.bf16 %v486, %v485
    %v499 = vpack.c.bf16 %v488, %v487
    %v500 = vpack.c.bf16 %v490, %v489
    %v501 = vpack.c.bf16 %v492, %v491
    %v502 = vpack.c.bf16 %v494, %v493
    %v503 = vld [vmem:[%s3] sm:$0xff]
    %v504 = vld [vmem:[%s3 + $0x8] sm:$0xff]
    %v505 = vld [vmem:[%s3 + $0x10] sm:$0xff]
    %v506 = vld [vmem:[%s3 + $0x18] sm:$0xff]
    %v507 = vld [vmem:[%s3 + $0x20] sm:$0xff]
    %v508 = vld [vmem:[%s3 + $0x28] sm:$0xff]
    %v509 = vld [vmem:[%s3 + $0x30] sm:$0xff]
    %v510 = vld [vmem:[%s3 + $0x38] sm:$0xff]
    %v511 = vld [vmem:[%s3 + $0x40] sm:$0xff]
    %v512 = vld [vmem:[%s3 + $0x48] sm:$0xff]
    %v513 = vld [vmem:[%s3 + $0x50] sm:$0xff]
    %v514 = vld [vmem:[%s3 + $0x58] sm:$0xff]
    %v515 = vld [vmem:[%s3 + $0x60] sm:$0xff]
    %v516 = vld [vmem:[%s3 + $0x68] sm:$0xff]
    %v517 = vpack.c.bf16 %v485, %v484
    %v518 = vpack.c.bf16 %v487, %v486
    %v519 = vpack.c.bf16 %v489, %v488
    %v520 = vpack.c.bf16 %v491, %v490
    %v521 = vpack.c.bf16 %v493, %v492
    %v522 = vpack.c.bf16 %v495, %v494
    %s523 = scalar_lea.vmem %s3, 112
    %v524 = vld [vmem:[%s523] sm:$0xff]
    %v525 = vld [vmem:[%s523 + $0x8] sm:$0xff]
    %v526 = vld [vmem:[%s523 + $0x10] sm:$0xff]
    %v527 = vld [vmem:[%s523 + $0x18] sm:$0xff]
    %v528 = vld [vmem:[%s523 + $0x20] sm:$0xff]
    %v529 = vld [vmem:[%s523 + $0x28] sm:$0xff]
    %v530 = vld [vmem:[%s523 + $0x30] sm:$0xff]
    %v531 = vld [vmem:[%s523 + $0x38] sm:$0xff]
    %v532 = vld [vmem:[%s523 + $0x40] sm:$0xff]
    %v533 = vld [vmem:[%s523 + $0x48] sm:$0xff]
    %v534 = vld [vmem:[%s523 + $0x50] sm:$0xff]
    %v535 = vld [vmem:[%s523 + $0x58] sm:$0xff]
    %v536 = vld [vmem:[%s523 + $0x60] sm:$0xff]
    %v537 = vld [vmem:[%s523 + $0x68] sm:$0xff]
    %v552 = vunpack.c.l.b16 %v524
    %v553 = vunpack.c.h.b16 %v524
    %v554 = vunpack.c.l.b16 %v525
    %v555 = vunpack.c.h.b16 %v525
    %v556 = vunpack.c.l.b16 %v526
    %v557 = vunpack.c.h.b16 %v526
    %v558 = vunpack.c.l.b16 %v527
    %v559 = vunpack.c.h.b16 %v527
    %v560 = vunpack.c.l.b16 %v528
    %v561 = vunpack.c.h.b16 %v528
    %v562 = vunpack.c.l.b16 %v529
    %v563 = vunpack.c.h.b16 %v529
    %v564 = vunpack.c.l.b16 %v530
    %v565 = vunpack.c.h.b16 %v530
    %v566 = vunpack.c.l.b16 %v531
    %v567 = vunpack.c.h.b16 %v531
    %v568 = vunpack.c.l.b16 %v532
    %v569 = vunpack.c.h.b16 %v532
    %v570 = vunpack.c.l.b16 %v533
    %v571 = vunpack.c.h.b16 %v533
    %v572 = vunpack.c.l.b16 %v534
    %v573 = vunpack.c.h.b16 %v534
    %v574 = vunpack.c.l.b16 %v535
    %v575 = vunpack.c.h.b16 %v535
    %v576 = vunpack.c.l.b16 %v536
    %v577 = vunpack.c.h.b16 %v536
    %v578 = vunpack.c.l.b16 %v537
    %v579 = vunpack.c.h.b16 %v537
    %v580 = vpack.c.b16 %v554, %v552
    %v581 = vpack.c.b16 %v555, %v553
    %v582 = vpack.c.b16 %v558, %v556
    %v583 = vpack.c.b16 %v559, %v557
    %v584 = vpack.c.b16 %v562, %v560
    %v585 = vpack.c.b16 %v563, %v561
    %v586 = vpack.c.b16 %v566, %v564
    %v587 = vpack.c.b16 %v567, %v565
    %v588 = vpack.c.b16 %v570, %v568
    %v589 = vpack.c.b16 %v571, %v569
    %v590 = vpack.c.b16 %v574, %v572
    %v591 = vpack.c.b16 %v575, %v573
    %v592 = vpack.c.b16 %v578, %v576
    %v593 = vpack.c.b16 %v579, %v577
    %vm608 = vcmask 916480
    %v610 = vsel %vm608, %v517, 0
    %v613 = vsel %vm608, %v518, 0
    %v616 = vsel %vm608, %v519, 0
    %v619 = vsel %vm608, %v520, 0
    %v622 = vsel %vm608, %v521, 0
    %v625 = vsel %vm608, %v522, 0
    %627 = vmatprep.subr.bf16.mxu0 %v581
    %628 = vmatpush1.bf16.msra.mxu0 %v580
    %629 = vmatprep.subr.bf16.mxu0 %v583
    %630 = vmatpush1.bf16.msra.mxu0 %v582
    %631 = vmatprep.subr.bf16.mxu0 %v585
    %632 = vmatpush1.bf16.msra.mxu0 %v584
    %633 = vmatprep.subr.bf16.mxu0 %v587
    %634 = vmatpush1.bf16.msra.mxu0 %v586
    %635 = vmatprep.subr.bf16.mxu0 %v589
    %636 = vmatpush1.bf16.msra.mxu0 %v588
    %637 = vmatprep.subr.bf16.mxu0 %v591
    %638 = vmatpush1.bf16.msra.mxu0 %v590
    %639 = vmatprep.subr.bf16.mxu0 %v593
    %640 = vmatpush1.bf16.msra.mxu0 %v592
    %641 = vmatprep.subr.bf16.mxu0 0
    %642 = vmatpush1.bf16.msra.mxu0 0
    %643 = vmatprep.subr.bf16.mxu0 0
    %644 = vmatpush1.bf16.msra.mxu0 0
    %645 = vmatprep.subr.bf16.mxu0 0
    %646 = vmatpush1.bf16.msra.mxu0 0
    %647 = vmatprep.subr.bf16.mxu0 0
    %648 = vmatpush1.bf16.msra.mxu0 0
    %649 = vmatprep.subr.bf16.mxu0 0
    %650 = vmatpush1.bf16.msra.mxu0 0
    %651 = vmatprep.subr.bf16.mxu0 0
    %652 = vmatpush1.bf16.msra.mxu0 0
    %653 = vmatprep.subr.bf16.mxu0 0
    %654 = vmatpush1.bf16.msra.mxu0 0
    %655 = vmatprep.subr.bf16.mxu0 0
    %656 = vmatpush1.bf16.msra.mxu0 0
    %657 = vmatprep.subr.bf16.mxu0 0
    %658 = vmatpush1.bf16.msra.mxu0 0
    %659 = vmatprep.mubr.bf16.mxu0 0
    %660 = vmatmul.mubr.bf16.gmra.mrb[0].mxu0 %v610
    %v661 = vpop.f32.mrb[0].mxu0
    %v662 = vadd.f32 0.0, %v661
    %v663 = vpop.f32.mrb[0].mxu0
    %v664 = vadd.f32 0.0, %v663
    %v665 = vpop.f32.mrb[0].mxu0
    %v666 = vadd.f32 0.0, %v665
    %v667 = vpop.f32.mrb[0].mxu0
    %v668 = vadd.f32 0.0, %v667
    %669 = vmatprep.mubr.bf16.mxu0 0
    %670 = vmatmul.mubr.bf16.gmra.mrb[0].mxu0 %v613
    %v671 = vpop.f32.mrb[0].mxu0
    %v672 = vadd.f32 0.0, %v671
    %v673 = vpop.f32.mrb[0].mxu0
    %v674 = vadd.f32 0.0, %v673
    %v675 = vpop.f32.mrb[0].mxu0
    %v676 = vadd.f32 0.0, %v675
    %v677 = vpop.f32.mrb[0].mxu0
    %v678 = vadd.f32 0.0, %v677
    %679 = vmatprep.mubr.bf16.mxu0 0
    %680 = vmatmul.mubr.bf16.gmra.mrb[0].mxu0 %v616
    %v681 = vpop.f32.mrb[0].mxu0
    %v682 = vadd.f32 0.0, %v681
    %v683 = vpop.f32.mrb[0].mxu0
    %v684 = vadd.f32 0.0, %v683
    %v685 = vpop.f32.mrb[0].mxu0
    %v686 = vadd.f32 0.0, %v685
    %v687 = vpop.f32.mrb[0].mxu0
    %v688 = vadd.f32 0.0, %v687
    %689 = vmatprep.mubr.bf16.mxu0 0
    %690 = vmatmul.mubr.bf16.gmra.mrb[0].mxu0 %v619
    %v691 = vpop.f32.mrb[0].mxu0
    %v692 = vadd.f32 0.0, %v691
    %v693 = vpop.f32.mrb[0].mxu0
    %v694 = vadd.f32 0.0, %v693
    %v695 = vpop.f32.mrb[0].mxu0
    %v696 = vadd.f32 0.0, %v695
    %v697 = vpop.f32.mrb[0].mxu0
    %v698 = vadd.f32 0.0, %v697
    %699 = vmatprep.mubr.bf16.mxu0 0
    %700 = vmatmul.mubr.bf16.gmra.mrb[0].mxu0 %v622
    %v701 = vpop.f32.mrb[0].mxu0
    %v702 = vadd.f32 0.0, %v701
    %v703 = vpop.f32.mrb[0].mxu0
    %v704 = vadd.f32 0.0, %v703
    %v705 = vpop.f32.mrb[0].mxu0
    %v706 = vadd.f32 0.0, %v705
    %v707 = vpop.f32.mrb[0].mxu0
    %v708 = vadd.f32 0.0, %v707
    %709 = vmatprep.mubr.bf16.mxu0 0
    %710 = vmatmul.mubr.bf16.gmra.mrb[0].mxu0 %v625
    %v711 = vpop.f32.mrb[0].mxu0
    %v712 = vadd.f32 0.0, %v711
    %v713 = vpop.f32.mrb[0].mxu0
    %v714 = vadd.f32 0.0, %v713
    %v715 = vpop.f32.mrb[0].mxu0
    %v716 = vadd.f32 0.0, %v715
    %v717 = vpop.f32.mrb[0].mxu0
    %v718 = vadd.f32 0.0, %v717
    %719 = vdwg.mxu0
    %v734 = vunpack.c.l.b16 %v503
    %v735 = vunpack.c.h.b16 %v503
    %v736 = vunpack.c.l.b16 %v504
    %v737 = vunpack.c.h.b16 %v504
    %v738 = vunpack.c.l.b16 %v505
    %v739 = vunpack.c.h.b16 %v505
    %v740 = vunpack.c.l.b16 %v506
    %v741 = vunpack.c.h.b16 %v506
    %v742 = vunpack.c.l.b16 %v507
    %v743 = vunpack.c.h.b16 %v507
    %v744 = vunpack.c.l.b16 %v508
    %v745 = vunpack.c.h.b16 %v508
    %v746 = vunpack.c.l.b16 %v509
    %v747 = vunpack.c.h.b16 %v509
    %v748 = vunpack.c.l.b16 %v510
    %v749 = vunpack.c.h.b16 %v510
    %v750 = vunpack.c.l.b16 %v511
    %v751 = vunpack.c.h.b16 %v511
    %v752 = vunpack.c.l.b16 %v512
    %v753 = vunpack.c.h.b16 %v512
    %v754 = vunpack.c.l.b16 %v513
    %v755 = vunpack.c.h.b16 %v513
    %v756 = vunpack.c.l.b16 %v514
    %v757 = vunpack.c.h.b16 %v514
    %v758 = vunpack.c.l.b16 %v515
    %v759 = vunpack.c.h.b16 %v515
    %v760 = vunpack.c.l.b16 %v516
    %v761 = vunpack.c.h.b16 %v516
    %v762 = vpack.c.b16 %v736, %v734
    %v763 = vpack.c.b16 %v737, %v735
    %v764 = vpack.c.b16 %v740, %v738
    %v765 = vpack.c.b16 %v741, %v739
    %v766 = vpack.c.b16 %v744, %v742
    %v767 = vpack.c.b16 %v745, %v743
    %v768 = vpack.c.b16 %v748, %v746
    %v769 = vpack.c.b16 %v749, %v747
    %v770 = vpack.c.b16 %v752, %v750
    %v771 = vpack.c.b16 %v753, %v751
    %v772 = vpack.c.b16 %v756, %v754
    %v773 = vpack.c.b16 %v757, %v755
    %v774 = vpack.c.b16 %v760, %v758
    %v775 = vpack.c.b16 %v761, %v759
    %v791 = vsel %vm608, %v497, 0
    %v794 = vsel %vm608, %v498, 0
    %v797 = vsel %vm608, %v499, 0
    %v800 = vsel %vm608, %v500, 0
    %v803 = vsel %vm608, %v501, 0
    %v806 = vsel %vm608, %v502, 0
    %808 = vmatprep.subr.bf16.mxu0 %v763
    %809 = vmatpush1.bf16.msra.mxu0 %v762
    %810 = vmatprep.subr.bf16.mxu0 %v765
    %811 = vmatpush1.bf16.msra.mxu0 %v764
    %812 = vmatprep.subr.bf16.mxu0 %v767
    %813 = vmatpush1.bf16.msra.mxu0 %v766
    %814 = vmatprep.subr.bf16.mxu0 %v769
    %815 = vmatpush1.bf16.msra.mxu0 %v768
    %816 = vmatprep.subr.bf16.mxu0 %v771
    %817 = vmatpush1.bf16.msra.mxu0 %v770
    %818 = vmatprep.subr.bf16.mxu0 %v773
    %819 = vmatpush1.bf16.msra.mxu0 %v772
    %820 = vmatprep.subr.bf16.mxu0 %v775
    %821 = vmatpush1.bf16.msra.mxu0 %v774
    %822 = vmatprep.subr.bf16.mxu0 0
    %823 = vmatpush1.bf16.msra.mxu0 0
    %824 = vmatprep.subr.bf16.mxu0 0
    %825 = vmatpush1.bf16.msra.mxu0 0
    %826 = vmatprep.subr.bf16.mxu0 0
    %827 = vmatpush1.bf16.msra.mxu0 0
    %828 = vmatprep.subr.bf16.mxu0 0
    %829 = vmatpush1.bf16.msra.mxu0 0
    %830 = vmatprep.subr.bf16.mxu0 0
    %831 = vmatpush1.bf16.msra.mxu0 0
    %832 = vmatprep.subr.bf16.mxu0 0
    %833 = vmatpush1.bf16.msra.mxu0 0
    %834 = vmatprep.subr.bf16.mxu0 0
    %835 = vmatpush1.bf16.msra.mxu0 0
    %836 = vmatprep.subr.bf16.mxu0 0
    %837 = vmatpush1.bf16.msra.mxu0 0
    %838 = vmatprep.subr.bf16.mxu0 0
    %839 = vmatpush1.bf16.msra.mxu0 0
    %840 = vmatprep.mubr.bf16.mxu0 0
    %841 = vmatmul.mubr.bf16.gmra.mrb[0].mxu0 %v791
    %v842 = vpop.f32.mrb[0].mxu0
    %v843 = vadd.f32 %v662, %v842
    %v844 = vpop.f32.mrb[0].mxu0
    %v845 = vadd.f32 %v664, %v844
    %v846 = vpop.f32.mrb[0].mxu0
    %v847 = vadd.f32 %v666, %v846
    %v848 = vpop.f32.mrb[0].mxu0
    %v849 = vadd.f32 %v668, %v848
    %850 = vmatprep.mubr.bf16.mxu0 0
    %851 = vmatmul.mubr.bf16.gmra.mrb[0].mxu0 %v794
    %v852 = vpop.f32.mrb[0].mxu0
    %v853 = vadd.f32 %v672, %v852
    %v854 = vpop.f32.mrb[0].mxu0
    %v855 = vadd.f32 %v674, %v854
    %v856 = vpop.f32.mrb[0].mxu0
    %v857 = vadd.f32 %v676, %v856
    %v858 = vpop.f32.mrb[0].mxu0
    %v859 = vadd.f32 %v678, %v858
    %860 = vmatprep.mubr.bf16.mxu0 0
    %861 = vmatmul.mubr.bf16.gmra.mrb[0].mxu0 %v797
    %v862 = vpop.f32.mrb[0].mxu0
    %v863 = vadd.f32 %v682, %v862
    %v864 = vpop.f32.mrb[0].mxu0
    %v865 = vadd.f32 %v684, %v864
    %v866 = vpop.f32.mrb[0].mxu0
    %v867 = vadd.f32 %v686, %v866
    %v868 = vpop.f32.mrb[0].mxu0
    %v869 = vadd.f32 %v688, %v868
    %870 = vmatprep.mubr.bf16.mxu0 0
    %871 = vmatmul.mubr.bf16.gmra.mrb[0].mxu0 %v800
    %v872 = vpop.f32.mrb[0].mxu0
    %v873 = vadd.f32 %v692, %v872
    %v874 = vpop.f32.mrb[0].mxu0
    %v875 = vadd.f32 %v694, %v874
    %v876 = vpop.f32.mrb[0].mxu0
    %v877 = vadd.f32 %v696, %v876
    %v878 = vpop.f32.mrb[0].mxu0
    %v879 = vadd.f32 %v698, %v878
    %880 = vmatprep.mubr.bf16.mxu0 0
    %881 = vmatmul.mubr.bf16.gmra.mrb[0].mxu0 %v803
    %v882 = vpop.f32.mrb[0].mxu0
    %v883 = vadd.f32 %v702, %v882
    %v884 = vpop.f32.mrb[0].mxu0
    %v885 = vadd.f32 %v704, %v884
    %v886 = vpop.f32.mrb[0].mxu0
    %v887 = vadd.f32 %v706, %v886
    %v888 = vpop.f32.mrb[0].mxu0
    %v889 = vadd.f32 %v708, %v888
    %890 = vmatprep.mubr.bf16.mxu0 0
    %891 = vmatmul.mubr.bf16.gmra.mrb[0].mxu0 %v806
    %v892 = vpop.f32.mrb[0].mxu0
    %v893 = vadd.f32 %v712, %v892
    %v894 = vpop.f32.mrb[0].mxu0
    %v895 = vadd.f32 %v714, %v894
    %v896 = vpop.f32.mrb[0].mxu0
    %v897 = vadd.f32 %v716, %v896
    %v898 = vpop.f32.mrb[0].mxu0
    %v899 = vadd.f32 %v718, %v898
    %900 = vdwg.mxu0
    %v901 = vpack.c.bf16 %v496, %v495
    %s902 = scalar_lea.vmem %s3, 224
    %v903 = vld [vmem:[%s902] sm:$0xff]
    %v904 = vld [vmem:[%s902 + $0x8] sm:$0xff]
    %v905 = vld [vmem:[%s902 + $0x10] sm:$0xff]
    %v906 = vld [vmem:[%s902 + $0x18] sm:$0xff]
    %v907 = vld [vmem:[%s902 + $0x20] sm:$0xff]
    %v908 = vld [vmem:[%s902 + $0x28] sm:$0xff]
    %v909 = vld [vmem:[%s902 + $0x30] sm:$0xff]
    %v910 = vld [vmem:[%s902 + $0x38] sm:$0xff]
    %v911 = vld [vmem:[%s902 + $0x40] sm:$0xff]
    %v912 = vld [vmem:[%s902 + $0x48] sm:$0xff]
    %v913 = vld [vmem:[%s902 + $0x50] sm:$0xff]
    %v914 = vld [vmem:[%s902 + $0x58] sm:$0xff]
    %v915 = vld [vmem:[%s902 + $0x60] sm:$0xff]
    %v916 = vld [vmem:[%s902 + $0x68] sm:$0xff]
    %v931 = vunpack.c.l.b16 %v903
    %v932 = vunpack.c.h.b16 %v903
    %v933 = vunpack.c.l.b16 %v904
    %v934 = vunpack.c.h.b16 %v904
    %v935 = vunpack.c.l.b16 %v905
    %v936 = vunpack.c.h.b16 %v905
    %v937 = vunpack.c.l.b16 %v906
    %v938 = vunpack.c.h.b16 %v906
    %v939 = vunpack.c.l.b16 %v907
    %v940 = vunpack.c.h.b16 %v907
    %v941 = vunpack.c.l.b16 %v908
    %v942 = vunpack.c.h.b16 %v908
    %v943 = vunpack.c.l.b16 %v909
    %v944 = vunpack.c.h.b16 %v909
    %v945 = vunpack.c.l.b16 %v910
    %v946 = vunpack.c.h.b16 %v910
    %v947 = vunpack.c.l.b16 %v911
    %v948 = vunpack.c.h.b16 %v911
    %v949 = vunpack.c.l.b16 %v912
    %v950 = vunpack.c.h.b16 %v912
    %v951 = vunpack.c.l.b16 %v913
    %v952 = vunpack.c.h.b16 %v913
    %v953 = vunpack.c.l.b16 %v914
    %v954 = vunpack.c.h.b16 %v914
    %v955 = vunpack.c.l.b16 %v915
    %v956 = vunpack.c.h.b16 %v915
    %v957 = vunpack.c.l.b16 %v916
    %v958 = vunpack.c.h.b16 %v916
    %v959 = vpack.c.b16 %v933, %v931
    %v960 = vpack.c.b16 %v934, %v932
    %v961 = vpack.c.b16 %v937, %v935
    %v962 = vpack.c.b16 %v938, %v936
    %v963 = vpack.c.b16 %v941, %v939
    %v964 = vpack.c.b16 %v942, %v940
    %v965 = vpack.c.b16 %v945, %v943
    %v966 = vpack.c.b16 %v946, %v944
    %v967 = vpack.c.b16 %v949, %v947
    %v968 = vpack.c.b16 %v950, %v948
    %v969 = vpack.c.b16 %v953, %v951
    %v970 = vpack.c.b16 %v954, %v952
    %v971 = vpack.c.b16 %v957, %v955
    %v972 = vpack.c.b16 %v958, %v956
    %v988 = vsel %vm608, %v901, 0
    %990 = vmatprep.subr.bf16.mxu0 %v960
    %991 = vmatpush1.bf16.msra.mxu0 %v959
    %992 = vmatprep.subr.bf16.mxu0 %v962
    %993 = vmatpush1.bf16.msra.mxu0 %v961
    %994 = vmatprep.subr.bf16.mxu0 %v964
    %995 = vmatpush1.bf16.msra.mxu0 %v963
    %996 = vmatprep.subr.bf16.mxu0 %v966
    %997 = vmatpush1.bf16.msra.mxu0 %v965
    %998 = vmatprep.subr.bf16.mxu0 %v968
    %999 = vmatpush1.bf16.msra.mxu0 %v967
    %1000 = vmatprep.subr.bf16.mxu0 %v970
    %1001 = vmatpush1.bf16.msra.mxu0 %v969
    %1002 = vmatprep.subr.bf16.mxu0 %v972
    %1003 = vmatpush1.bf16.msra.mxu0 %v971
    %1004 = vmatprep.subr.bf16.mxu0 0
    %1005 = vmatpush1.bf16.msra.mxu0 0
    %1006 = vmatprep.subr.bf16.mxu0 0
    %1007 = vmatpush1.bf16.msra.mxu0 0
    %1008 = vmatprep.subr.bf16.mxu0 0
    %1009 = vmatpush1.bf16.msra.mxu0 0
    %1010 = vmatprep.subr.bf16.mxu0 0
    %1011 = vmatpush1.bf16.msra.mxu0 0
    %1012 = vmatprep.subr.bf16.mxu0 0
    %1013 = vmatpush1.bf16.msra.mxu0 0
    %1014 = vmatprep.subr.bf16.mxu0 0
    %1015 = vmatpush1.bf16.msra.mxu0 0
    %1016 = vmatprep.subr.bf16.mxu0 0
    %1017 = vmatpush1.bf16.msra.mxu0 0
    %1018 = vmatprep.subr.bf16.mxu0 0
    %1019 = vmatpush1.bf16.msra.mxu0 0
    %1020 = vmatprep.subr.bf16.mxu0 0
    %1021 = vmatpush1.bf16.msra.mxu0 0
    %1022 = vmatprep.mubr.bf16.mxu0 0
    %1023 = vmatmul.mubr.bf16.gmra.mrb[0].mxu0 %v794
    %v1024 = vpop.f32.mrb[0].mxu0
    %v1025 = vadd.f32 0.0, %v1024
    %v1026 = vpop.f32.mrb[0].mxu0
    %v1027 = vadd.f32 0.0, %v1026
    %v1028 = vpop.f32.mrb[0].mxu0
    %v1029 = vadd.f32 0.0, %v1028
    %v1030 = vpop.f32.mrb[0].mxu0
    %v1031 = vadd.f32 0.0, %v1030
    %1032 = vmatprep.mubr.bf16.mxu0 0
    %1033 = vmatmul.mubr.bf16.gmra.mrb[0].mxu0 %v797
    %v1034 = vpop.f32.mrb[0].mxu0
    %v1035 = vadd.f32 0.0, %v1034
    %v1036 = vpop.f32.mrb[0].mxu0
    %v1037 = vadd.f32 0.0, %v1036
    %v1038 = vpop.f32.mrb[0].mxu0
    %v1039 = vadd.f32 0.0, %v1038
    %v1040 = vpop.f32.mrb[0].mxu0
    %v1041 = vadd.f32 0.0, %v1040
    %1042 = vmatprep.mubr.bf16.mxu0 0
    %1043 = vmatmul.mubr.bf16.gmra.mrb[0].mxu0 %v800
    %v1044 = vpop.f32.mrb[0].mxu0
    %v1045 = vadd.f32 0.0, %v1044
    %v1046 = vpop.f32.mrb[0].mxu0
    %v1047 = vadd.f32 0.0, %v1046
    %v1048 = vpop.f32.mrb[0].mxu0
    %v1049 = vadd.f32 0.0, %v1048
    %v1050 = vpop.f32.mrb[0].mxu0
    %v1051 = vadd.f32 0.0, %v1050
    %1052 = vmatprep.mubr.bf16.mxu0 0
    %1053 = vmatmul.mubr.bf16.gmra.mrb[0].mxu0 %v803
    %v1054 = vpop.f32.mrb[0].mxu0
    %v1055 = vadd.f32 0.0, %v1054
    %v1056 = vpop.f32.mrb[0].mxu0
    %v1057 = vadd.f32 0.0, %v1056
    %v1058 = vpop.f32.mrb[0].mxu0
    %v1059 = vadd.f32 0.0, %v1058
    %v1060 = vpop.f32.mrb[0].mxu0
    %v1061 = vadd.f32 0.0, %v1060
    %1062 = vmatprep.mubr.bf16.mxu0 0
    %1063 = vmatmul.mubr.bf16.gmra.mrb[0].mxu0 %v806
    %v1064 = vpop.f32.mrb[0].mxu0
    %v1065 = vadd.f32 0.0, %v1064
    %v1066 = vpop.f32.mrb[0].mxu0
    %v1067 = vadd.f32 0.0, %v1066
    %v1068 = vpop.f32.mrb[0].mxu0
    %v1069 = vadd.f32 0.0, %v1068
    %v1070 = vpop.f32.mrb[0].mxu0
    %v1071 = vadd.f32 0.0, %v1070
    %1072 = vmatprep.mubr.bf16.mxu0 0
    %1073 = vmatmul.mubr.bf16.gmra.mrb[0].mxu0 %v988
    %v1074 = vpop.f32.mrb[0].mxu0
    %v1075 = vadd.f32 0.0, %v1074
    %v1076 = vpop.f32.mrb[0].mxu0
    %v1077 = vadd.f32 0.0, %v1076
    %v1078 = vpop.f32.mrb[0].mxu0
    %v1079 = vadd.f32 0.0, %v1078
    %v1080 = vpop.f32.mrb[0].mxu0
    %v1081 = vadd.f32 0.0, %v1080
    %1082 = vdwg.mxu0
    %v1083 = vadd.f32 %v843, %v1025
    %v1084 = vadd.f32 %v845, %v1027
    %v1085 = vadd.f32 %v847, %v1029
    %v1086 = vadd.f32 %v849, %v1031
    %v1087 = vadd.f32 %v853, %v1035
    %v1088 = vadd.f32 %v855, %v1037
    %v1089 = vadd.f32 %v857, %v1039
    %v1090 = vadd.f32 %v859, %v1041
    %v1091 = vadd.f32 %v863, %v1045
    %v1092 = vadd.f32 %v865, %v1047
    %v1093 = vadd.f32 %v867, %v1049
    %v1094 = vadd.f32 %v869, %v1051
    %v1095 = vadd.f32 %v873, %v1055
    %v1096 = vadd.f32 %v875, %v1057
    %v1097 = vadd.f32 %v877, %v1059
    %v1098 = vadd.f32 %v879, %v1061
    %v1099 = vadd.f32 %v883, %v1065
    %v1100 = vadd.f32 %v885, %v1067
    %v1101 = vadd.f32 %v887, %v1069
    %v1102 = vadd.f32 %v889, %v1071
    %v1103 = vadd.f32 %v893, %v1075
    %v1104 = vadd.f32 %v895, %v1077
    %v1105 = vadd.f32 %v897, %v1079
    %v1106 = vadd.f32 %v899, %v1081
    %v1107 = vld [vmem:[%s4] sm:$0x3]
    %v1109 = vlaneseq
    %v1110 = vshrl.u32 %v1109, 7
    %v1111 = vsub.s32 0, %v1110
    %v1112 = vrot.slane %v1107, %v1111
    %v1113 = vlaneseq
    %v1114 = vshrl.u32 %v1113, 7
    %v1115 = vsub.s32 1, %v1114
    %v1116 = vrot.slane %v1107, %v1115
    %v1119 = vadd.f32 %v1083, %v1112
    %v1120 = vadd.f32 %v1084, %v1116
    %v1121 = vadd.f32 %v1085, %v1112
    %v1122 = vadd.f32 %v1086, %v1116
    %v1123 = vadd.f32 %v1087, %v1112
    %v1124 = vadd.f32 %v1088, %v1116
    %v1125 = vadd.f32 %v1089, %v1112
    %v1126 = vadd.f32 %v1090, %v1116
    %v1127 = vadd.f32 %v1091, %v1112
    %v1128 = vadd.f32 %v1092, %v1116
    %v1129 = vadd.f32 %v1093, %v1112
    %v1130 = vadd.f32 %v1094, %v1116
    %v1131 = vadd.f32 %v1095, %v1112
    %v1132 = vadd.f32 %v1096, %v1116
    %v1133 = vadd.f32 %v1097, %v1112
    %v1134 = vadd.f32 %v1098, %v1116
    %v1135 = vadd.f32 %v1099, %v1112
    %v1136 = vadd.f32 %v1100, %v1116
    %v1137 = vadd.f32 %v1101, %v1112
    %v1138 = vadd.f32 %v1102, %v1116
    %v1139 = vadd.f32 %v1103, %v1112
    %v1140 = vadd.f32 %v1104, %v1116
    %v1141 = vadd.f32 %v1105, %v1112
    %v1142 = vadd.f32 %v1106, %v1116
    %v1143 = vmax.f32 %v1119, 0.0
    %v1144 = vmax.f32 %v1120, 0.0
    %v1145 = vmax.f32 %v1121, 0.0
    %v1146 = vmax.f32 %v1122, 0.0
    %v1147 = vmax.f32 %v1123, 0.0
    %v1148 = vmax.f32 %v1124, 0.0
    %v1149 = vmax.f32 %v1125, 0.0
    %v1150 = vmax.f32 %v1126, 0.0
    %v1151 = vmax.f32 %v1127, 0.0
    %v1152 = vmax.f32 %v1128, 0.0
    %v1153 = vmax.f32 %v1129, 0.0
    %v1154 = vmax.f32 %v1130, 0.0
    %v1155 = vmax.f32 %v1131, 0.0
    %v1156 = vmax.f32 %v1132, 0.0
    %v1157 = vmax.f32 %v1133, 0.0
    %v1158 = vmax.f32 %v1134, 0.0
    %v1159 = vmax.f32 %v1135, 0.0
    %v1160 = vmax.f32 %v1136, 0.0
    %v1161 = vmax.f32 %v1137, 0.0
    %v1162 = vmax.f32 %v1138, 0.0
    %v1163 = vmax.f32 %v1139, 0.0
    %v1164 = vmax.f32 %v1140, 0.0
    %v1165 = vmax.f32 %v1141, 0.0
    %v1166 = vmax.f32 %v1142, 0.0
    %v1167 = vpack.c.bf16 %v1143, %v1143
    %v1168 = vpack.c.bf16 %v1144, %v1144
    %v1169 = vld [vmem:[#allocation2] sm:$0xf]
    %v1170 = vld [vmem:[#allocation2 + $0x4] sm:$0xf]
    %v1171 = vld [vmem:[#allocation2 + $0x8] sm:$0xf]
    %v1172 = vld [vmem:[#allocation2 + $0xc] sm:$0xf]
    %v1173 = vld [vmem:[#allocation2 + $0x10] sm:$0xf]
    %v1174 = vld [vmem:[#allocation2 + $0x14] sm:$0xf]
    %v1175 = vld [vmem:[#allocation2 + $0x18] sm:$0xf]
    %v1176 = vld [vmem:[#allocation2 + $0x1c] sm:$0xf]
    %v1177 = vld [vmem:[#allocation2 + $0x20] sm:$0xf]
    %v1178 = vld [vmem:[#allocation2 + $0x24] sm:$0xf]
    %v1179 = vld [vmem:[#allocation2 + $0x28] sm:$0xf]
    %v1180 = vld [vmem:[#allocation2 + $0x2c] sm:$0xf]
    %v1181 = vld [vmem:[#allocation2 + $0x30] sm:$0xf]
    %v1182 = vld [vmem:[#allocation2 + $0x34] sm:$0xf]
    %v1183 = vld [vmem:[#allocation2 + $0x38] sm:$0xf]
    %v1184 = vld [vmem:[#allocation2 + $0x3c] sm:$0xf]
    %v1185 = vld [vmem:[#allocation2 + $0x40] sm:$0xf]
    %v1186 = vld [vmem:[#allocation2 + $0x44] sm:$0xf]
    %v1187 = vld [vmem:[#allocation2 + $0x48] sm:$0xf]
    %v1188 = vld [vmem:[#allocation2 + $0x4c] sm:$0xf]
    %v1189 = vld [vmem:[#allocation2 + $0x50] sm:$0xf]
    %v1190 = vld [vmem:[#allocation2 + $0x54] sm:$0xf]
    %v1191 = vld [vmem:[#allocation2 + $0x58] sm:$0xf]
    %v1192 = vld [vmem:[#allocation2 + $0x5c] sm:$0xf]
    %v1193 = vpack.c.bf16 %v1145, %v1145
    %v1194 = vpack.c.bf16 %v1146, %v1146
    %s1195 = scalar_lea.vmem [#allocation2], 96
    %v1196 = vld [vmem:[%s1195] sm:$0xf]
    %v1197 = vld [vmem:[%s1195 + $0x4] sm:$0xf]
    %v1198 = vld [vmem:[%s1195 + $0x8] sm:$0xf]
    %v1199 = vld [vmem:[%s1195 + $0xc] sm:$0xf]
    %v1200 = vld [vmem:[%s1195 + $0x10] sm:$0xf]
    %v1201 = vld [vmem:[%s1195 + $0x14] sm:$0xf]
    %v1202 = vld [vmem:[%s1195 + $0x18] sm:$0xf]
    %v1203 = vld [vmem:[%s1195 + $0x1c] sm:$0xf]
    %v1204 = vld [vmem:[%s1195 + $0x20] sm:$0xf]
    %v1205 = vld [vmem:[%s1195 + $0x24] sm:$0xf]
    %v1206 = vld [vmem:[%s1195 + $0x28] sm:$0xf]
    %v1207 = vld [vmem:[%s1195 + $0x2c] sm:$0xf]
    %v1208 = vld [vmem:[%s1195 + $0x30] sm:$0xf]
    %v1209 = vld [vmem:[%s1195 + $0x34] sm:$0xf]
    %v1210 = vld [vmem:[%s1195 + $0x38] sm:$0xf]
    %v1211 = vld [vmem:[%s1195 + $0x3c] sm:$0xf]
    %v1212 = vld [vmem:[%s1195 + $0x40] sm:$0xf]
    %v1213 = vld [vmem:[%s1195 + $0x44] sm:$0xf]
    %v1214 = vld [vmem:[%s1195 + $0x48] sm:$0xf]
    %v1215 = vld [vmem:[%s1195 + $0x4c] sm:$0xf]
    %v1216 = vld [vmem:[%s1195 + $0x50] sm:$0xf]
    %v1217 = vld [vmem:[%s1195 + $0x54] sm:$0xf]
    %v1218 = vld [vmem:[%s1195 + $0x58] sm:$0xf]
    %v1219 = vld [vmem:[%s1195 + $0x5c] sm:$0xf]
    %v1244 = vunpack.c.l.b16 %v1196
    %v1245 = vunpack.c.l.b16 %v1197
    %v1246 = vunpack.c.l.b16 %v1198
    %v1247 = vunpack.c.l.b16 %v1199
    %v1248 = vunpack.c.l.b16 %v1200
    %v1249 = vunpack.c.l.b16 %v1201
    %v1250 = vunpack.c.l.b16 %v1202
    %v1251 = vunpack.c.l.b16 %v1203
    %v1252 = vunpack.c.l.b16 %v1204
    %v1253 = vunpack.c.l.b16 %v1205
    %v1254 = vunpack.c.l.b16 %v1206
    %v1255 = vunpack.c.l.b16 %v1207
    %v1256 = vunpack.c.l.b16 %v1208
    %v1257 = vunpack.c.l.b16 %v1209
    %v1258 = vunpack.c.l.b16 %v1210
    %v1259 = vunpack.c.l.b16 %v1211
    %v1260 = vunpack.c.l.b16 %v1212
    %v1261 = vunpack.c.l.b16 %v1213
    %v1262 = vunpack.c.l.b16 %v1214
    %v1263 = vunpack.c.l.b16 %v1215
    %v1264 = vunpack.c.l.b16 %v1216
    %v1265 = vunpack.c.l.b16 %v1217
    %v1266 = vunpack.c.l.b16 %v1218
    %v1267 = vunpack.c.l.b16 %v1219
    %v1268 = vpack.c.b16 %v1245, %v1244
    %v1269 = vpack.c.b16 %v1247, %v1246
    %v1270 = vpack.c.b16 %v1249, %v1248
    %v1271 = vpack.c.b16 %v1251, %v1250
    %v1272 = vpack.c.b16 %v1253, %v1252
    %v1273 = vpack.c.b16 %v1255, %v1254
    %v1274 = vpack.c.b16 %v1257, %v1256
    %v1275 = vpack.c.b16 %v1259, %v1258
    %v1276 = vpack.c.b16 %v1261, %v1260
    %v1277 = vpack.c.b16 %v1263, %v1262
    %v1278 = vpack.c.b16 %v1265, %v1264
    %v1279 = vpack.c.b16 %v1267, %v1266
    %vm1292 = vcmask 523264
    %v1294 = vsel %vm1292, %v1194, 0
    %1296 = vmatprep.subr.bf16.mxu0 0
    %1297 = vmatpush1.bf16.msra.mxu0 %v1268
    %1298 = vmatprep.subr.bf16.mxu0 0
    %1299 = vmatpush1.bf16.msra.mxu0 %v1269
    %1300 = vmatprep.subr.bf16.mxu0 0
    %1301 = vmatpush1.bf16.msra.mxu0 %v1270
    %1302 = vmatprep.subr.bf16.mxu0 0
    %1303 = vmatpush1.bf16.msra.mxu0 %v1271
    %1304 = vmatprep.subr.bf16.mxu0 0
    %1305 = vmatpush1.bf16.msra.mxu0 %v1272
    %1306 = vmatprep.subr.bf16.mxu0 0
    %1307 = vmatpush1.bf16.msra.mxu0 %v1273
    %1308 = vmatprep.subr.bf16.mxu0 0
    %1309 = vmatpush1.bf16.msra.mxu0 %v1274
    %1310 = vmatprep.subr.bf16.mxu0 0
    %1311 = vmatpush1.bf16.msra.mxu0 %v1275
    %1312 = vmatprep.subr.bf16.mxu0 0
    %1313 = vmatpush1.bf16.msra.mxu0 %v1276
    %1314 = vmatprep.subr.bf16.mxu0 0
    %1315 = vmatpush1.bf16.msra.mxu0 %v1277
    %1316 = vmatprep.subr.bf16.mxu0 0
    %1317 = vmatpush1.bf16.msra.mxu0 %v1278
    %1318 = vmatprep.subr.bf16.mxu0 0
    %1319 = vmatpush1.bf16.msra.mxu0 %v1279
    %1320 = vmatprep.subr.bf16.mxu0 0
    %1321 = vmatpush1.bf16.msra.mxu0 0
    %1322 = vmatprep.subr.bf16.mxu0 0
    %1323 = vmatpush1.bf16.msra.mxu0 0
    %1324 = vmatprep.subr.bf16.mxu0 0
    %1325 = vmatpush1.bf16.msra.mxu0 0
    %1326 = vmatprep.subr.bf16.mxu0 0
    %1327 = vmatpush1.bf16.msra.mxu0 0
    %1328 = vmatprep.mubr.bf16.mxu0 %v1294
    %1329 = vmatmul.mubr.bf16.gmra.mrb[0].mxu0 %v1193
    %v1330 = vpop.f32.mrb[0].mxu0
    %v1331 = vadd.f32 0.0, %v1330
    %v1332 = vpop.f32.mrb[0].mxu0
    %v1333 = vpop.f32.mrb[0].mxu0
    %v1334 = vpop.f32.mrb[0].mxu0
    %1335 = vdwg.mxu0
    %v1360 = vunpack.c.l.b16 %v1169
    %v1361 = vunpack.c.l.b16 %v1170
    %v1362 = vunpack.c.l.b16 %v1171
    %v1363 = vunpack.c.l.b16 %v1172
    %v1364 = vunpack.c.l.b16 %v1173
    %v1365 = vunpack.c.l.b16 %v1174
    %v1366 = vunpack.c.l.b16 %v1175
    %v1367 = vunpack.c.l.b16 %v1176
    %v1368 = vunpack.c.l.b16 %v1177
    %v1369 = vunpack.c.l.b16 %v1178
    %v1370 = vunpack.c.l.b16 %v1179
    %v1371 = vunpack.c.l.b16 %v1180
    %v1372 = vunpack.c.l.b16 %v1181
    %v1373 = vunpack.c.l.b16 %v1182
    %v1374 = vunpack.c.l.b16 %v1183
    %v1375 = vunpack.c.l.b16 %v1184
    %v1376 = vunpack.c.l.b16 %v1185
    %v1377 = vunpack.c.l.b16 %v1186
    %v1378 = vunpack.c.l.b16 %v1187
    %v1379 = vunpack.c.l.b16 %v1188
    %v1380 = vunpack.c.l.b16 %v1189
    %v1381 = vunpack.c.l.b16 %v1190
    %v1382 = vunpack.c.l.b16 %v1191
    %v1383 = vunpack.c.l.b16 %v1192
    %v1384 = vpack.c.b16 %v1361, %v1360
    %v1385 = vpack.c.b16 %v1363, %v1362
    %v1386 = vpack.c.b16 %v1365, %v1364
    %v1387 = vpack.c.b16 %v1367, %v1366
    %v1388 = vpack.c.b16 %v1369, %v1368
    %v1389 = vpack.c.b16 %v1371, %v1370
    %v1390 = vpack.c.b16 %v1373, %v1372
    %v1391 = vpack.c.b16 %v1375, %v1374
    %v1392 = vpack.c.b16 %v1377, %v1376
    %v1393 = vpack.c.b16 %v1379, %v1378
    %v1394 = vpack.c.b16 %v1381, %v1380
    %v1395 = vpack.c.b16 %v1383, %v1382
    %v1409 = vsel %vm1292, %v1168, 0
    %1411 = vmatprep.subr.bf16.mxu0 0
    %1412 = vmatpush1.bf16.msra.mxu0 %v1384
    %1413 = vmatprep.subr.bf16.mxu0 0
    %1414 = vmatpush1.bf16.msra.mxu0 %v1385
    %1415 = vmatprep.subr.bf16.mxu0 0
    %1416 = vmatpush1.bf16.msra.mxu0 %v1386
    %1417 = vmatprep.subr.bf16.mxu0 0
    %1418 = vmatpush1.bf16.msra.mxu0 %v1387
    %1419 = vmatprep.subr.bf16.mxu0 0
    %1420 = vmatpush1.bf16.msra.mxu0 %v1388
    %1421 = vmatprep.subr.bf16.mxu0 0
    %1422 = vmatpush1.bf16.msra.mxu0 %v1389
    %1423 = vmatprep.subr.bf16.mxu0 0
    %1424 = vmatpush1.bf16.msra.mxu0 %v1390
    %1425 = vmatprep.subr.bf16.mxu0 0
    %1426 = vmatpush1.bf16.msra.mxu0 %v1391
    %1427 = vmatprep.subr.bf16.mxu0 0
    %1428 = vmatpush1.bf16.msra.mxu0 %v1392
    %1429 = vmatprep.subr.bf16.mxu0 0
    %1430 = vmatpush1.bf16.msra.mxu0 %v1393
    %1431 = vmatprep.subr.bf16.mxu0 0
    %1432 = vmatpush1.bf16.msra.mxu0 %v1394
    %1433 = vmatprep.subr.bf16.mxu0 0
    %1434 = vmatpush1.bf16.msra.mxu0 %v1395
    %1435 = vmatprep.subr.bf16.mxu0 0
    %1436 = vmatpush1.bf16.msra.mxu0 0
    %1437 = vmatprep.subr.bf16.mxu0 0
    %1438 = vmatpush1.bf16.msra.mxu0 0
    %1439 = vmatprep.subr.bf16.mxu0 0
    %1440 = vmatpush1.bf16.msra.mxu0 0
    %1441 = vmatprep.subr.bf16.mxu0 0
    %1442 = vmatpush1.bf16.msra.mxu0 0
    %1443 = vmatprep.mubr.bf16.mxu0 %v1409
    %1444 = vmatmul.mubr.bf16.gmra.mrb[0].mxu0 %v1167
    %v1445 = vpop.f32.mrb[0].mxu0
    %v1446 = vadd.f32 %v1331, %v1445
    %v1447 = vpop.f32.mrb[0].mxu0
    %v1448 = vpop.f32.mrb[0].mxu0
    %v1449 = vpop.f32.mrb[0].mxu0
    %1450 = vdwg.mxu0
    %v1451 = vpack.c.bf16 %v1147, %v1147
    %v1452 = vpack.c.bf16 %v1148, %v1148
    %s1453 = scalar_lea.vmem [#allocation2], 192
    %v1454 = vld [vmem:[%s1453] sm:$0xf]
    %v1455 = vld [vmem:[%s1453 + $0x4] sm:$0xf]
    %v1456 = vld [vmem:[%s1453 + $0x8] sm:$0xf]
    %v1457 = vld [vmem:[%s1453 + $0xc] sm:$0xf]
    %v1458 = vld [vmem:[%s1453 + $0x10] sm:$0xf]
    %v1459 = vld [vmem:[%s1453 + $0x14] sm:$0xf]
    %v1460 = vld [vmem:[%s1453 + $0x18] sm:$0xf]
    %v1461 = vld [vmem:[%s1453 + $0x1c] sm:$0xf]
    %v1462 = vld [vmem:[%s1453 + $0x20] sm:$0xf]
    %v1463 = vld [vmem:[%s1453 + $0x24] sm:$0xf]
    %v1464 = vld [vmem:[%s1453 + $0x28] sm:$0xf]
    %v1465 = vld [vmem:[%s1453 + $0x2c] sm:$0xf]
    %v1466 = vld [vmem:[%s1453 + $0x30] sm:$0xf]
    %v1467 = vld [vmem:[%s1453 + $0x34] sm:$0xf]
    %v1468 = vld [vmem:[%s1453 + $0x38] sm:$0xf]
    %v1469 = vld [vmem:[%s1453 + $0x3c] sm:$0xf]
    %v1470 = vld [vmem:[%s1453 + $0x40] sm:$0xf]
    %v1471 = vld [vmem:[%s1453 + $0x44] sm:$0xf]
    %v1472 = vld [vmem:[%s1453 + $0x48] sm:$0xf]
    %v1473 = vld [vmem:[%s1453 + $0x4c] sm:$0xf]
    %v1474 = vld [vmem:[%s1453 + $0x50] sm:$0xf]
    %v1475 = vld [vmem:[%s1453 + $0x54] sm:$0xf]
    %v1476 = vld [vmem:[%s1453 + $0x58] sm:$0xf]
    %v1477 = vld [vmem:[%s1453 + $0x5c] sm:$0xf]
    %v1502 = vunpack.c.l.b16 %v1454
    %v1503 = vunpack.c.l.b16 %v1455
    %v1504 = vunpack.c.l.b16 %v1456
    %v1505 = vunpack.c.l.b16 %v1457
    %v1506 = vunpack.c.l.b16 %v1458
    %v1507 = vunpack.c.l.b16 %v1459
    %v1508 = vunpack.c.l.b16 %v1460
    %v1509 = vunpack.c.l.b16 %v1461
    %v1510 = vunpack.c.l.b16 %v1462
    %v1511 = vunpack.c.l.b16 %v1463
    %v1512 = vunpack.c.l.b16 %v1464
    %v1513 = vunpack.c.l.b16 %v1465
    %v1514 = vunpack.c.l.b16 %v1466
    %v1515 = vunpack.c.l.b16 %v1467
    %v1516 = vunpack.c.l.b16 %v1468
    %v1517 = vunpack.c.l.b16 %v1469
    %v1518 = vunpack.c.l.b16 %v1470
    %v1519 = vunpack.c.l.b16 %v1471
    %v1520 = vunpack.c.l.b16 %v1472
    %v1521 = vunpack.c.l.b16 %v1473
    %v1522 = vunpack.c.l.b16 %v1474
    %v1523 = vunpack.c.l.b16 %v1475
    %v1524 = vunpack.c.l.b16 %v1476
    %v1525 = vunpack.c.l.b16 %v1477
    %v1526 = vpack.c.b16 %v1503, %v1502
    %v1527 = vpack.c.b16 %v1505, %v1504
    %v1528 = vpack.c.b16 %v1507, %v1506
    %v1529 = vpack.c.b16 %v1509, %v1508
    %v1530 = vpack.c.b16 %v1511, %v1510
    %v1531 = vpack.c.b16 %v1513, %v1512
    %v1532 = vpack.c.b16 %v1515, %v1514
    %v1533 = vpack.c.b16 %v1517, %v1516
    %v1534 = vpack.c.b16 %v1519, %v1518
    %v1535 = vpack.c.b16 %v1521, %v1520
    %v1536 = vpack.c.b16 %v1523, %v1522
    %v1537 = vpack.c.b16 %v1525, %v1524
    %v1551 = vsel %vm1292, %v1452, 0
    %1553 = vmatprep.subr.bf16.mxu0 0
    %1554 = vmatpush1.bf16.msra.mxu0 %v1526
    %1555 = vmatprep.subr.bf16.mxu0 0
    %1556 = vmatpush1.bf16.msra.mxu0 %v1527
    %1557 = vmatprep.subr.bf16.mxu0 0
    %1558 = vmatpush1.bf16.msra.mxu0 %v1528
    %1559 = vmatprep.subr.bf16.mxu0 0
    %1560 = vmatpush1.bf16.msra.mxu0 %v1529
    %1561 = vmatprep.subr.bf16.mxu0 0
    %1562 = vmatpush1.bf16.msra.mxu0 %v1530
    %1563 = vmatprep.subr.bf16.mxu0 0
    %1564 = vmatpush1.bf16.msra.mxu0 %v1531
    %1565 = vmatprep.subr.bf16.mxu0 0
    %1566 = vmatpush1.bf16.msra.mxu0 %v1532
    %1567 = vmatprep.subr.bf16.mxu0 0
    %1568 = vmatpush1.bf16.msra.mxu0 %v1533
    %1569 = vmatprep.subr.bf16.mxu0 0
    %1570 = vmatpush1.bf16.msra.mxu0 %v1534
    %1571 = vmatprep.subr.bf16.mxu0 0
    %1572 = vmatpush1.bf16.msra.mxu0 %v1535
    %1573 = vmatprep.subr.bf16.mxu0 0
    %1574 = vmatpush1.bf16.msra.mxu0 %v1536
    %1575 = vmatprep.subr.bf16.mxu0 0
    %1576 = vmatpush1.bf16.msra.mxu0 %v1537
    %1577 = vmatprep.subr.bf16.mxu0 0
    %1578 = vmatpush1.bf16.msra.mxu0 0
    %1579 = vmatprep.subr.bf16.mxu0 0
    %1580 = vmatpush1.bf16.msra.mxu0 0
    %1581 = vmatprep.subr.bf16.mxu0 0
    %1582 = vmatpush1.bf16.msra.mxu0 0
    %1583 = vmatprep.subr.bf16.mxu0 0
    %1584 = vmatpush1.bf16.msra.mxu0 0
    %1585 = vmatprep.mubr.bf16.mxu0 %v1551
    %1586 = vmatmul.mubr.bf16.gmra.mrb[0].mxu0 %v1451
    %v1587 = vpop.f32.mrb[0].mxu0
    %v1588 = vadd.f32 0.0, %v1587
    %v1589 = vpop.f32.mrb[0].mxu0
    %v1590 = vpop.f32.mrb[0].mxu0
    %v1591 = vpop.f32.mrb[0].mxu0
    %1592 = vdwg.mxu0
    %v1593 = vadd.f32 %v1446, %v1588
    %v1594 = vpack.c.bf16 %v1149, %v1149
    %v1595 = vpack.c.bf16 %v1150, %v1150
    %s1596 = scalar_lea.vmem [#allocation2], 288
    %v1597 = vld [vmem:[%s1596] sm:$0xf]
    %v1598 = vld [vmem:[%s1596 + $0x4] sm:$0xf]
    %v1599 = vld [vmem:[%s1596 + $0x8] sm:$0xf]
    %v1600 = vld [vmem:[%s1596 + $0xc] sm:$0xf]
    %v1601 = vld [vmem:[%s1596 + $0x10] sm:$0xf]
    %v1602 = vld [vmem:[%s1596 + $0x14] sm:$0xf]
    %v1603 = vld [vmem:[%s1596 + $0x18] sm:$0xf]
    %v1604 = vld [vmem:[%s1596 + $0x1c] sm:$0xf]
    %v1605 = vld [vmem:[%s1596 + $0x20] sm:$0xf]
    %v1606 = vld [vmem:[%s1596 + $0x24] sm:$0xf]
    %v1607 = vld [vmem:[%s1596 + $0x28] sm:$0xf]
    %v1608 = vld [vmem:[%s1596 + $0x2c] sm:$0xf]
    %v1609 = vld [vmem:[%s1596 + $0x30] sm:$0xf]
    %v1610 = vld [vmem:[%s1596 + $0x34] sm:$0xf]
    %v1611 = vld [vmem:[%s1596 + $0x38] sm:$0xf]
    %v1612 = vld [vmem:[%s1596 + $0x3c] sm:$0xf]
    %v1613 = vld [vmem:[%s1596 + $0x40] sm:$0xf]
    %v1614 = vld [vmem:[%s1596 + $0x44] sm:$0xf]
    %v1615 = vld [vmem:[%s1596 + $0x48] sm:$0xf]
    %v1616 = vld [vmem:[%s1596 + $0x4c] sm:$0xf]
    %v1617 = vld [vmem:[%s1596 + $0x50] sm:$0xf]
    %v1618 = vld [vmem:[%s1596 + $0x54] sm:$0xf]
    %v1619 = vld [vmem:[%s1596 + $0x58] sm:$0xf]
    %v1620 = vld [vmem:[%s1596 + $0x5c] sm:$0xf]
    %v1645 = vunpack.c.l.b16 %v1597
    %v1646 = vunpack.c.l.b16 %v1598
    %v1647 = vunpack.c.l.b16 %v1599
    %v1648 = vunpack.c.l.b16 %v1600
    %v1649 = vunpack.c.l.b16 %v1601
    %v1650 = vunpack.c.l.b16 %v1602
    %v1651 = vunpack.c.l.b16 %v1603
    %v1652 = vunpack.c.l.b16 %v1604
    %v1653 = vunpack.c.l.b16 %v1605
    %v1654 = vunpack.c.l.b16 %v1606
    %v1655 = vunpack.c.l.b16 %v1607
    %v1656 = vunpack.c.l.b16 %v1608
    %v1657 = vunpack.c.l.b16 %v1609
    %v1658 = vunpack.c.l.b16 %v1610
    %v1659 = vunpack.c.l.b16 %v1611
    %v1660 = vunpack.c.l.b16 %v1612
    %v1661 = vunpack.c.l.b16 %v1613
    %v1662 = vunpack.c.l.b16 %v1614
    %v1663 = vunpack.c.l.b16 %v1615
    %v1664 = vunpack.c.l.b16 %v1616
    %v1665 = vunpack.c.l.b16 %v1617
    %v1666 = vunpack.c.l.b16 %v1618
    %v1667 = vunpack.c.l.b16 %v1619
    %v1668 = vunpack.c.l.b16 %v1620
    %v1669 = vpack.c.b16 %v1646, %v1645
    %v1670 = vpack.c.b16 %v1648, %v1647
    %v1671 = vpack.c.b16 %v1650, %v1649
    %v1672 = vpack.c.b16 %v1652, %v1651
    %v1673 = vpack.c.b16 %v1654, %v1653
    %v1674 = vpack.c.b16 %v1656, %v1655
    %v1675 = vpack.c.b16 %v1658, %v1657
    %v1676 = vpack.c.b16 %v1660, %v1659
    %v1677 = vpack.c.b16 %v1662, %v1661
    %v1678 = vpack.c.b16 %v1664, %v1663
    %v1679 = vpack.c.b16 %v1666, %v1665
    %v1680 = vpack.c.b16 %v1668, %v1667
    %v1694 = vsel %vm1292, %v1595, 0
    %1696 = vmatprep.subr.bf16.mxu0 0
    %1697 = vmatpush1.bf16.msra.mxu0 %v1669
    %1698 = vmatprep.subr.bf16.mxu0 0
    %1699 = vmatpush1.bf16.msra.mxu0 %v1670
    %1700 = vmatprep.subr.bf16.mxu0 0
    %1701 = vmatpush1.bf16.msra.mxu0 %v1671
    %1702 = vmatprep.subr.bf16.mxu0 0
    %1703 = vmatpush1.bf16.msra.mxu0 %v1672
    %1704 = vmatprep.subr.bf16.mxu0 0
    %1705 = vmatpush1.bf16.msra.mxu0 %v1673
    %1706 = vmatprep.subr.bf16.mxu0 0
    %1707 = vmatpush1.bf16.msra.mxu0 %v1674
    %1708 = vmatprep.subr.bf16.mxu0 0
    %1709 = vmatpush1.bf16.msra.mxu0 %v1675
    %1710 = vmatprep.subr.bf16.mxu0 0
    %1711 = vmatpush1.bf16.msra.mxu0 %v1676
    %1712 = vmatprep.subr.bf16.mxu0 0
    %1713 = vmatpush1.bf16.msra.mxu0 %v1677
    %1714 = vmatprep.subr.bf16.mxu0 0
    %1715 = vmatpush1.bf16.msra.mxu0 %v1678
    %1716 = vmatprep.subr.bf16.mxu0 0
    %1717 = vmatpush1.bf16.msra.mxu0 %v1679
    %1718 = vmatprep.subr.bf16.mxu0 0
    %1719 = vmatpush1.bf16.msra.mxu0 %v1680
    %1720 = vmatprep.subr.bf16.mxu0 0
    %1721 = vmatpush1.bf16.msra.mxu0 0
    %1722 = vmatprep.subr.bf16.mxu0 0
    %1723 = vmatpush1.bf16.msra.mxu0 0
    %1724 = vmatprep.subr.bf16.mxu0 0
    %1725 = vmatpush1.bf16.msra.mxu0 0
    %1726 = vmatprep.subr.bf16.mxu0 0
    %1727 = vmatpush1.bf16.msra.mxu0 0
    %1728 = vmatprep.mubr.bf16.mxu0 %v1694
    %1729 = vmatmul.mubr.bf16.gmra.mrb[0].mxu0 %v1594
    %v1730 = vpop.f32.mrb[0].mxu0
    %v1731 = vadd.f32 0.0, %v1730
    %v1732 = vpop.f32.mrb[0].mxu0
    %v1733 = vpop.f32.mrb[0].mxu0
    %v1734 = vpop.f32.mrb[0].mxu0
    %1735 = vdwg.mxu0
    %v1736 = vadd.f32 %v1593, %v1731
    %v1737 = vpack.c.bf16 %v1151, %v1151
    %v1738 = vpack.c.bf16 %v1152, %v1152
    %s1739 = scalar_lea.vmem [#allocation2], 384
    %v1740 = vld [vmem:[%s1739] sm:$0xf]
    %v1741 = vld [vmem:[%s1739 + $0x4] sm:$0xf]
    %v1742 = vld [vmem:[%s1739 + $0x8] sm:$0xf]
    %v1743 = vld [vmem:[%s1739 + $0xc] sm:$0xf]
    %v1744 = vld [vmem:[%s1739 + $0x10] sm:$0xf]
    %v1745 = vld [vmem:[%s1739 + $0x14] sm:$0xf]
    %v1746 = vld [vmem:[%s1739 + $0x18] sm:$0xf]
    %v1747 = vld [vmem:[%s1739 + $0x1c] sm:$0xf]
    %v1748 = vld [vmem:[%s1739 + $0x20] sm:$0xf]
    %v1749 = vld [vmem:[%s1739 + $0x24] sm:$0xf]
    %v1750 = vld [vmem:[%s1739 + $0x28] sm:$0xf]
    %v1751 = vld [vmem:[%s1739 + $0x2c] sm:$0xf]
    %v1752 = vld [vmem:[%s1739 + $0x30] sm:$0xf]
    %v1753 = vld [vmem:[%s1739 + $0x34] sm:$0xf]
    %v1754 = vld [vmem:[%s1739 + $0x38] sm:$0xf]
    %v1755 = vld [vmem:[%s1739 + $0x3c] sm:$0xf]
    %v1756 = vld [vmem:[%s1739 + $0x40] sm:$0xf]
    %v1757 = vld [vmem:[%s1739 + $0x44] sm:$0xf]
    %v1758 = vld [vmem:[%s1739 + $0x48] sm:$0xf]
    %v1759 = vld [vmem:[%s1739 + $0x4c] sm:$0xf]
    %v1760 = vld [vmem:[%s1739 + $0x50] sm:$0xf]
    %v1761 = vld [vmem:[%s1739 + $0x54] sm:$0xf]
    %v1762 = vld [vmem:[%s1739 + $0x58] sm:$0xf]
    %v1763 = vld [vmem:[%s1739 + $0x5c] sm:$0xf]
    %v1788 = vunpack.c.l.b16 %v1740
    %v1789 = vunpack.c.l.b16 %v1741
    %v1790 = vunpack.c.l.b16 %v1742
    %v1791 = vunpack.c.l.b16 %v1743
    %v1792 = vunpack.c.l.b16 %v1744
    %v1793 = vunpack.c.l.b16 %v1745
    %v1794 = vunpack.c.l.b16 %v1746
    %v1795 = vunpack.c.l.b16 %v1747
    %v1796 = vunpack.c.l.b16 %v1748
    %v1797 = vunpack.c.l.b16 %v1749
    %v1798 = vunpack.c.l.b16 %v1750
    %v1799 = vunpack.c.l.b16 %v1751
    %v1800 = vunpack.c.l.b16 %v1752
    %v1801 = vunpack.c.l.b16 %v1753
    %v1802 = vunpack.c.l.b16 %v1754
    %v1803 = vunpack.c.l.b16 %v1755
    %v1804 = vunpack.c.l.b16 %v1756
    %v1805 = vunpack.c.l.b16 %v1757
    %v1806 = vunpack.c.l.b16 %v1758
    %v1807 = vunpack.c.l.b16 %v1759
    %v1808 = vunpack.c.l.b16 %v1760
    %v1809 = vunpack.c.l.b16 %v1761
    %v1810 = vunpack.c.l.b16 %v1762
    %v1811 = vunpack.c.l.b16 %v1763
    %v1812 = vpack.c.b16 %v1789, %v1788
    %v1813 = vpack.c.b16 %v1791, %v1790
    %v1814 = vpack.c.b16 %v1793, %v1792
    %v1815 = vpack.c.b16 %v1795, %v1794
    %v1816 = vpack.c.b16 %v1797, %v1796
    %v1817 = vpack.c.b16 %v1799, %v1798
    %v1818 = vpack.c.b16 %v1801, %v1800
    %v1819 = vpack.c.b16 %v1803, %v1802
    %v1820 = vpack.c.b16 %v1805, %v1804
    %v1821 = vpack.c.b16 %v1807, %v1806
    %v1822 = vpack.c.b16 %v1809, %v1808
    %v1823 = vpack.c.b16 %v1811, %v1810
    %v1837 = vsel %vm1292, %v1738, 0
    %1839 = vmatprep.subr.bf16.mxu0 0
    %1840 = vmatpush1.bf16.msra.mxu0 %v1812
    %1841 = vmatprep.subr.bf16.mxu0 0
    %1842 = vmatpush1.bf16.msra.mxu0 %v1813
    %1843 = vmatprep.subr.bf16.mxu0 0
    %1844 = vmatpush1.bf16.msra.mxu0 %v1814
    %1845 = vmatprep.subr.bf16.mxu0 0
    %1846 = vmatpush1.bf16.msra.mxu0 %v1815
    %1847 = vmatprep.subr.bf16.mxu0 0
    %1848 = vmatpush1.bf16.msra.mxu0 %v1816
    %1849 = vmatprep.subr.bf16.mxu0 0
    %1850 = vmatpush1.bf16.msra.mxu0 %v1817
    %1851 = vmatprep.subr.bf16.mxu0 0
    %1852 = vmatpush1.bf16.msra.mxu0 %v1818
    %1853 = vmatprep.subr.bf16.mxu0 0
    %1854 = vmatpush1.bf16.msra.mxu0 %v1819
    %1855 = vmatprep.subr.bf16.mxu0 0
    %1856 = vmatpush1.bf16.msra.mxu0 %v1820
    %1857 = vmatprep.subr.bf16.mxu0 0
    %1858 = vmatpush1.bf16.msra.mxu0 %v1821
    %1859 = vmatprep.subr.bf16.mxu0 0
    %1860 = vmatpush1.bf16.msra.mxu0 %v1822
    %1861 = vmatprep.subr.bf16.mxu0 0
    %1862 = vmatpush1.bf16.msra.mxu0 %v1823
    %1863 = vmatprep.subr.bf16.mxu0 0
    %1864 = vmatpush1.bf16.msra.mxu0 0
    %1865 = vmatprep.subr.bf16.mxu0 0
    %1866 = vmatpush1.bf16.msra.mxu0 0
    %1867 = vmatprep.subr.bf16.mxu0 0
    %1868 = vmatpush1.bf16.msra.mxu0 0
    %1869 = vmatprep.subr.bf16.mxu0 0
    %1870 = vmatpush1.bf16.msra.mxu0 0
    %1871 = vmatprep.mubr.bf16.mxu0 %v1837
    %1872 = vmatmul.mubr.bf16.gmra.mrb[0].mxu0 %v1737
    %v1873 = vpop.f32.mrb[0].mxu0
    %v1874 = vadd.f32 0.0, %v1873
    %v1875 = vpop.f32.mrb[0].mxu0
    %v1876 = vpop.f32.mrb[0].mxu0
    %v1877 = vpop.f32.mrb[0].mxu0
    %1878 = vdwg.mxu0
    %v1879 = vadd.f32 %v1736, %v1874
    %v1880 = vpack.c.bf16 %v1153, %v1153
    %v1881 = vpack.c.bf16 %v1154, %v1154
    %s1882 = scalar_lea.vmem [#allocation2], 480
    %v1883 = vld [vmem:[%s1882] sm:$0xf]
    %v1884 = vld [vmem:[%s1882 + $0x4] sm:$0xf]
    %v1885 = vld [vmem:[%s1882 + $0x8] sm:$0xf]
    %v1886 = vld [vmem:[%s1882 + $0xc] sm:$0xf]
    %v1887 = vld [vmem:[%s1882 + $0x10] sm:$0xf]
    %v1888 = vld [vmem:[%s1882 + $0x14] sm:$0xf]
    %v1889 = vld [vmem:[%s1882 + $0x18] sm:$0xf]
    %v1890 = vld [vmem:[%s1882 + $0x1c] sm:$0xf]
    %v1891 = vld [vmem:[%s1882 + $0x20] sm:$0xf]
    %v1892 = vld [vmem:[%s1882 + $0x24] sm:$0xf]
    %v1893 = vld [vmem:[%s1882 + $0x28] sm:$0xf]
    %v1894 = vld [vmem:[%s1882 + $0x2c] sm:$0xf]
    %v1895 = vld [vmem:[%s1882 + $0x30] sm:$0xf]
    %v1896 = vld [vmem:[%s1882 + $0x34] sm:$0xf]
    %v1897 = vld [vmem:[%s1882 + $0x38] sm:$0xf]
    %v1898 = vld [vmem:[%s1882 + $0x3c] sm:$0xf]
    %v1899 = vld [vmem:[%s1882 + $0x40] sm:$0xf]
    %v1900 = vld [vmem:[%s1882 + $0x44] sm:$0xf]
    %v1901 = vld [vmem:[%s1882 + $0x48] sm:$0xf]
    %v1902 = vld [vmem:[%s1882 + $0x4c] sm:$0xf]
    %v1903 = vld [vmem:[%s1882 + $0x50] sm:$0xf]
    %v1904 = vld [vmem:[%s1882 + $0x54] sm:$0xf]
    %v1905 = vld [vmem:[%s1882 + $0x58] sm:$0xf]
    %v1906 = vld [vmem:[%s1882 + $0x5c] sm:$0xf]
    %v1931 = vunpack.c.l.b16 %v1883
    %v1932 = vunpack.c.l.b16 %v1884
    %v1933 = vunpack.c.l.b16 %v1885
    %v1934 = vunpack.c.l.b16 %v1886
    %v1935 = vunpack.c.l.b16 %v1887
    %v1936 = vunpack.c.l.b16 %v1888
    %v1937 = vunpack.c.l.b16 %v1889
    %v1938 = vunpack.c.l.b16 %v1890
    %v1939 = vunpack.c.l.b16 %v1891
    %v1940 = vunpack.c.l.b16 %v1892
    %v1941 = vunpack.c.l.b16 %v1893
    %v1942 = vunpack.c.l.b16 %v1894
    %v1943 = vunpack.c.l.b16 %v1895
    %v1944 = vunpack.c.l.b16 %v1896
    %v1945 = vunpack.c.l.b16 %v1897
    %v1946 = vunpack.c.l.b16 %v1898
    %v1947 = vunpack.c.l.b16 %v1899
    %v1948 = vunpack.c.l.b16 %v1900
    %v1949 = vunpack.c.l.b16 %v1901
    %v1950 = vunpack.c.l.b16 %v1902
    %v1951 = vunpack.c.l.b16 %v1903
    %v1952 = vunpack.c.l.b16 %v1904
    %v1953 = vunpack.c.l.b16 %v1905
    %v1954 = vunpack.c.l.b16 %v1906
    %v1955 = vpack.c.b16 %v1932, %v1931
    %v1956 = vpack.c.b16 %v1934, %v1933
    %v1957 = vpack.c.b16 %v1936, %v1935
    %v1958 = vpack.c.b16 %v1938, %v1937
    %v1959 = vpack.c.b16 %v1940, %v1939
    %v1960 = vpack.c.b16 %v1942, %v1941
    %v1961 = vpack.c.b16 %v1944, %v1943
    %v1962 = vpack.c.b16 %v1946, %v1945
    %v1963 = vpack.c.b16 %v1948, %v1947
    %v1964 = vpack.c.b16 %v1950, %v1949
    %v1965 = vpack.c.b16 %v1952, %v1951
    %v1966 = vpack.c.b16 %v1954, %v1953
    %v1980 = vsel %vm1292, %v1881, 0
    %1982 = vmatprep.subr.bf16.mxu0 0
    %1983 = vmatpush1.bf16.msra.mxu0 %v1955
    %1984 = vmatprep.subr.bf16.mxu0 0
    %1985 = vmatpush1.bf16.msra.mxu0 %v1956
    %1986 = vmatprep.subr.bf16.mxu0 0
    %1987 = vmatpush1.bf16.msra.mxu0 %v1957
    %1988 = vmatprep.subr.bf16.mxu0 0
    %1989 = vmatpush1.bf16.msra.mxu0 %v1958
    %1990 = vmatprep.subr.bf16.mxu0 0
    %1991 = vmatpush1.bf16.msra.mxu0 %v1959
    %1992 = vmatprep.subr.bf16.mxu0 0
    %1993 = vmatpush1.bf16.msra.mxu0 %v1960
    %1994 = vmatprep.subr.bf16.mxu0 0
    %1995 = vmatpush1.bf16.msra.mxu0 %v1961
    %1996 = vmatprep.subr.bf16.mxu0 0
    %1997 = vmatpush1.bf16.msra.mxu0 %v1962
    %1998 = vmatprep.subr.bf16.mxu0 0
    %1999 = vmatpush1.bf16.msra.mxu0 %v1963
    %2000 = vmatprep.subr.bf16.mxu0 0
    %2001 = vmatpush1.bf16.msra.mxu0 %v1964
    %2002 = vmatprep.subr.bf16.mxu0 0
    %2003 = vmatpush1.bf16.msra.mxu0 %v1965
    %2004 = vmatprep.subr.bf16.mxu0 0
    %2005 = vmatpush1.bf16.msra.mxu0 %v1966
    %2006 = vmatprep.subr.bf16.mxu0 0
    %2007 = vmatpush1.bf16.msra.mxu0 0
    %2008 = vmatprep.subr.bf16.mxu0 0
    %2009 = vmatpush1.bf16.msra.mxu0 0
    %2010 = vmatprep.subr.bf16.mxu0 0
    %2011 = vmatpush1.bf16.msra.mxu0 0
    %2012 = vmatprep.subr.bf16.mxu0 0
    %2013 = vmatpush1.bf16.msra.mxu0 0
    %2014 = vmatprep.mubr.bf16.mxu0 %v1980
    %2015 = vmatmul.mubr.bf16.gmra.mrb[0].mxu0 %v1880
    %v2016 = vpop.f32.mrb[0].mxu0
    %v2017 = vadd.f32 0.0, %v2016
    %v2018 = vpop.f32.mrb[0].mxu0
    %v2019 = vpop.f32.mrb[0].mxu0
    %v2020 = vpop.f32.mrb[0].mxu0
    %2021 = vdwg.mxu0
    %v2022 = vadd.f32 %v1879, %v2017
    %v2023 = vpack.c.bf16 %v1155, %v1155
    %v2024 = vpack.c.bf16 %v1156, %v1156
    %s2025 = scalar_lea.vmem [#allocation2], 576
    %v2026 = vld [vmem:[%s2025] sm:$0xf]
    %v2027 = vld [vmem:[%s2025 + $0x4] sm:$0xf]
    %v2028 = vld [vmem:[%s2025 + $0x8] sm:$0xf]
    %v2029 = vld [vmem:[%s2025 + $0xc] sm:$0xf]
    %v2030 = vld [vmem:[%s2025 + $0x10] sm:$0xf]
    %v2031 = vld [vmem:[%s2025 + $0x14] sm:$0xf]
    %v2032 = vld [vmem:[%s2025 + $0x18] sm:$0xf]
    %v2033 = vld [vmem:[%s2025 + $0x1c] sm:$0xf]
    %v2034 = vld [vmem:[%s2025 + $0x20] sm:$0xf]
    %v2035 = vld [vmem:[%s2025 + $0x24] sm:$0xf]
    %v2036 = vld [vmem:[%s2025 + $0x28] sm:$0xf]
    %v2037 = vld [vmem:[%s2025 + $0x2c] sm:$0xf]
    %v2038 = vld [vmem:[%s2025 + $0x30] sm:$0xf]
    %v2039 = vld [vmem:[%s2025 + $0x34] sm:$0xf]
    %v2040 = vld [vmem:[%s2025 + $0x38] sm:$0xf]
    %v2041 = vld [vmem:[%s2025 + $0x3c] sm:$0xf]
    %v2042 = vld [vmem:[%s2025 + $0x40] sm:$0xf]
    %v2043 = vld [vmem:[%s2025 + $0x44] sm:$0xf]
    %v2044 = vld [vmem:[%s2025 + $0x48] sm:$0xf]
    %v2045 = vld [vmem:[%s2025 + $0x4c] sm:$0xf]
    %v2046 = vld [vmem:[%s2025 + $0x50] sm:$0xf]
    %v2047 = vld [vmem:[%s2025 + $0x54] sm:$0xf]
    %v2048 = vld [vmem:[%s2025 + $0x58] sm:$0xf]
    %v2049 = vld [vmem:[%s2025 + $0x5c] sm:$0xf]
    %v2074 = vunpack.c.l.b16 %v2026
    %v2075 = vunpack.c.l.b16 %v2027
    %v2076 = vunpack.c.l.b16 %v2028
    %v2077 = vunpack.c.l.b16 %v2029
    %v2078 = vunpack.c.l.b16 %v2030
    %v2079 = vunpack.c.l.b16 %v2031
    %v2080 = vunpack.c.l.b16 %v2032
    %v2081 = vunpack.c.l.b16 %v2033
    %v2082 = vunpack.c.l.b16 %v2034
    %v2083 = vunpack.c.l.b16 %v2035
    %v2084 = vunpack.c.l.b16 %v2036
    %v2085 = vunpack.c.l.b16 %v2037
    %v2086 = vunpack.c.l.b16 %v2038
    %v2087 = vunpack.c.l.b16 %v2039
    %v2088 = vunpack.c.l.b16 %v2040
    %v2089 = vunpack.c.l.b16 %v2041
    %v2090 = vunpack.c.l.b16 %v2042
    %v2091 = vunpack.c.l.b16 %v2043
    %v2092 = vunpack.c.l.b16 %v2044
    %v2093 = vunpack.c.l.b16 %v2045
    %v2094 = vunpack.c.l.b16 %v2046
    %v2095 = vunpack.c.l.b16 %v2047
    %v2096 = vunpack.c.l.b16 %v2048
    %v2097 = vunpack.c.l.b16 %v2049
    %v2098 = vpack.c.b16 %v2075, %v2074
    %v2099 = vpack.c.b16 %v2077, %v2076
    %v2100 = vpack.c.b16 %v2079, %v2078
    %v2101 = vpack.c.b16 %v2081, %v2080
    %v2102 = vpack.c.b16 %v2083, %v2082
    %v2103 = vpack.c.b16 %v2085, %v2084
    %v2104 = vpack.c.b16 %v2087, %v2086
    %v2105 = vpack.c.b16 %v2089, %v2088
    %v2106 = vpack.c.b16 %v2091, %v2090
    %v2107 = vpack.c.b16 %v2093, %v2092
    %v2108 = vpack.c.b16 %v2095, %v2094
    %v2109 = vpack.c.b16 %v2097, %v2096
    %v2123 = vsel %vm1292, %v2024, 0
    %2125 = vmatprep.subr.bf16.mxu0 0
    %2126 = vmatpush1.bf16.msra.mxu0 %v2098
    %2127 = vmatprep.subr.bf16.mxu0 0
    %2128 = vmatpush1.bf16.msra.mxu0 %v2099
    %2129 = vmatprep.subr.bf16.mxu0 0
    %2130 = vmatpush1.bf16.msra.mxu0 %v2100
    %2131 = vmatprep.subr.bf16.mxu0 0
    %2132 = vmatpush1.bf16.msra.mxu0 %v2101
    %2133 = vmatprep.subr.bf16.mxu0 0
    %2134 = vmatpush1.bf16.msra.mxu0 %v2102
    %2135 = vmatprep.subr.bf16.mxu0 0
    %2136 = vmatpush1.bf16.msra.mxu0 %v2103
    %2137 = vmatprep.subr.bf16.mxu0 0
    %2138 = vmatpush1.bf16.msra.mxu0 %v2104
    %2139 = vmatprep.subr.bf16.mxu0 0
    %2140 = vmatpush1.bf16.msra.mxu0 %v2105
    %2141 = vmatprep.subr.bf16.mxu0 0
    %2142 = vmatpush1.bf16.msra.mxu0 %v2106
    %2143 = vmatprep.subr.bf16.mxu0 0
    %2144 = vmatpush1.bf16.msra.mxu0 %v2107
    %2145 = vmatprep.subr.bf16.mxu0 0
    %2146 = vmatpush1.bf16.msra.mxu0 %v2108
    %2147 = vmatprep.subr.bf16.mxu0 0
    %2148 = vmatpush1.bf16.msra.mxu0 %v2109
    %2149 = vmatprep.subr.bf16.mxu0 0
    %2150 = vmatpush1.bf16.msra.mxu0 0
    %2151 = vmatprep.subr.bf16.mxu0 0
    %2152 = vmatpush1.bf16.msra.mxu0 0
    %2153 = vmatprep.subr.bf16.mxu0 0
    %2154 = vmatpush1.bf16.msra.mxu0 0
    %2155 = vmatprep.subr.bf16.mxu0 0
    %2156 = vmatpush1.bf16.msra.mxu0 0
    %2157 = vmatprep.mubr.bf16.mxu0 %v2123
    %2158 = vmatmul.mubr.bf16.gmra.mrb[0].mxu0 %v2023
    %v2159 = vpop.f32.mrb[0].mxu0
    %v2160 = vadd.f32 0.0, %v2159
    %v2161 = vpop.f32.mrb[0].mxu0
    %v2162 = vpop.f32.mrb[0].mxu0
    %v2163 = vpop.f32.mrb[0].mxu0
    %2164 = vdwg.mxu0
    %v2165 = vadd.f32 %v2022, %v2160
    %v2166 = vpack.c.bf16 %v1157, %v1157
    %v2167 = vpack.c.bf16 %v1158, %v1158
    %s2168 = scalar_lea.vmem [#allocation2], 672
    %v2169 = vld [vmem:[%s2168] sm:$0xf]
    %v2170 = vld [vmem:[%s2168 + $0x4] sm:$0xf]
    %v2171 = vld [vmem:[%s2168 + $0x8] sm:$0xf]
    %v2172 = vld [vmem:[%s2168 + $0xc] sm:$0xf]
    %v2173 = vld [vmem:[%s2168 + $0x10] sm:$0xf]
    %v2174 = vld [vmem:[%s2168 + $0x14] sm:$0xf]
    %v2175 = vld [vmem:[%s2168 + $0x18] sm:$0xf]
    %v2176 = vld [vmem:[%s2168 + $0x1c] sm:$0xf]
    %v2177 = vld [vmem:[%s2168 + $0x20] sm:$0xf]
    %v2178 = vld [vmem:[%s2168 + $0x24] sm:$0xf]
    %v2179 = vld [vmem:[%s2168 + $0x28] sm:$0xf]
    %v2180 = vld [vmem:[%s2168 + $0x2c] sm:$0xf]
    %v2181 = vld [vmem:[%s2168 + $0x30] sm:$0xf]
    %v2182 = vld [vmem:[%s2168 + $0x34] sm:$0xf]
    %v2183 = vld [vmem:[%s2168 + $0x38] sm:$0xf]
    %v2184 = vld [vmem:[%s2168 + $0x3c] sm:$0xf]
    %v2185 = vld [vmem:[%s2168 + $0x40] sm:$0xf]
    %v2186 = vld [vmem:[%s2168 + $0x44] sm:$0xf]
    %v2187 = vld [vmem:[%s2168 + $0x48] sm:$0xf]
    %v2188 = vld [vmem:[%s2168 + $0x4c] sm:$0xf]
    %v2189 = vld [vmem:[%s2168 + $0x50] sm:$0xf]
    %v2190 = vld [vmem:[%s2168 + $0x54] sm:$0xf]
    %v2191 = vld [vmem:[%s2168 + $0x58] sm:$0xf]
    %v2192 = vld [vmem:[%s2168 + $0x5c] sm:$0xf]
    %v2217 = vunpack.c.l.b16 %v2169
    %v2218 = vunpack.c.l.b16 %v2170
    %v2219 = vunpack.c.l.b16 %v2171
    %v2220 = vunpack.c.l.b16 %v2172
    %v2221 = vunpack.c.l.b16 %v2173
    %v2222 = vunpack.c.l.b16 %v2174
    %v2223 = vunpack.c.l.b16 %v2175
    %v2224 = vunpack.c.l.b16 %v2176
    %v2225 = vunpack.c.l.b16 %v2177
    %v2226 = vunpack.c.l.b16 %v2178
    %v2227 = vunpack.c.l.b16 %v2179
    %v2228 = vunpack.c.l.b16 %v2180
    %v2229 = vunpack.c.l.b16 %v2181
    %v2230 = vunpack.c.l.b16 %v2182
    %v2231 = vunpack.c.l.b16 %v2183
    %v2232 = vunpack.c.l.b16 %v2184
    %v2233 = vunpack.c.l.b16 %v2185
    %v2234 = vunpack.c.l.b16 %v2186
    %v2235 = vunpack.c.l.b16 %v2187
    %v2236 = vunpack.c.l.b16 %v2188
    %v2237 = vunpack.c.l.b16 %v2189
    %v2238 = vunpack.c.l.b16 %v2190
    %v2239 = vunpack.c.l.b16 %v2191
    %v2240 = vunpack.c.l.b16 %v2192
    %v2241 = vpack.c.b16 %v2218, %v2217
    %v2242 = vpack.c.b16 %v2220, %v2219
    %v2243 = vpack.c.b16 %v2222, %v2221
    %v2244 = vpack.c.b16 %v2224, %v2223
    %v2245 = vpack.c.b16 %v2226, %v2225
    %v2246 = vpack.c.b16 %v2228, %v2227
    %v2247 = vpack.c.b16 %v2230, %v2229
    %v2248 = vpack.c.b16 %v2232, %v2231
    %v2249 = vpack.c.b16 %v2234, %v2233
    %v2250 = vpack.c.b16 %v2236, %v2235
    %v2251 = vpack.c.b16 %v2238, %v2237
    %v2252 = vpack.c.b16 %v2240, %v2239
    %v2266 = vsel %vm1292, %v2167, 0
    %2268 = vmatprep.subr.bf16.mxu0 0
    %2269 = vmatpush1.bf16.msra.mxu0 %v2241
    %2270 = vmatprep.subr.bf16.mxu0 0
    %2271 = vmatpush1.bf16.msra.mxu0 %v2242
    %2272 = vmatprep.subr.bf16.mxu0 0
    %2273 = vmatpush1.bf16.msra.mxu0 %v2243
    %2274 = vmatprep.subr.bf16.mxu0 0
    %2275 = vmatpush1.bf16.msra.mxu0 %v2244
    %2276 = vmatprep.subr.bf16.mxu0 0
    %2277 = vmatpush1.bf16.msra.mxu0 %v2245
    %2278 = vmatprep.subr.bf16.mxu0 0
    %2279 = vmatpush1.bf16.msra.mxu0 %v2246
    %2280 = vmatprep.subr.bf16.mxu0 0
    %2281 = vmatpush1.bf16.msra.mxu0 %v2247
    %2282 = vmatprep.subr.bf16.mxu0 0
    %2283 = vmatpush1.bf16.msra.mxu0 %v2248
    %2284 = vmatprep.subr.bf16.mxu0 0
    %2285 = vmatpush1.bf16.msra.mxu0 %v2249
    %2286 = vmatprep.subr.bf16.mxu0 0
    %2287 = vmatpush1.bf16.msra.mxu0 %v2250
    %2288 = vmatprep.subr.bf16.mxu0 0
    %2289 = vmatpush1.bf16.msra.mxu0 %v2251
    %2290 = vmatprep.subr.bf16.mxu0 0
    %2291 = vmatpush1.bf16.msra.mxu0 %v2252
    %2292 = vmatprep.subr.bf16.mxu0 0
    %2293 = vmatpush1.bf16.msra.mxu0 0
    %2294 = vmatprep.subr.bf16.mxu0 0
    %2295 = vmatpush1.bf16.msra.mxu0 0
    %2296 = vmatprep.subr.bf16.mxu0 0
    %2297 = vmatpush1.bf16.msra.mxu0 0
    %2298 = vmatprep.subr.bf16.mxu0 0
    %2299 = vmatpush1.bf16.msra.mxu0 0
    %2300 = vmatprep.mubr.bf16.mxu0 %v2266
    %2301 = vmatmul.mubr.bf16.gmra.mrb[0].mxu0 %v2166
    %v2302 = vpop.f32.mrb[0].mxu0
    %v2303 = vadd.f32 0.0, %v2302
    %v2304 = vpop.f32.mrb[0].mxu0
    %v2305 = vpop.f32.mrb[0].mxu0
    %v2306 = vpop.f32.mrb[0].mxu0
    %2307 = vdwg.mxu0
    %v2308 = vadd.f32 %v2165, %v2303
    %v2309 = vpack.c.bf16 %v1159, %v1159
    %v2310 = vpack.c.bf16 %v1160, %v1160
    %s2311 = scalar_lea.vmem [#allocation2], 768
    %v2312 = vld [vmem:[%s2311] sm:$0xf]
    %v2313 = vld [vmem:[%s2311 + $0x4] sm:$0xf]
    %v2314 = vld [vmem:[%s2311 + $0x8] sm:$0xf]
    %v2315 = vld [vmem:[%s2311 + $0xc] sm:$0xf]
    %v2316 = vld [vmem:[%s2311 + $0x10] sm:$0xf]
    %v2317 = vld [vmem:[%s2311 + $0x14] sm:$0xf]
    %v2318 = vld [vmem:[%s2311 + $0x18] sm:$0xf]
    %v2319 = vld [vmem:[%s2311 + $0x1c] sm:$0xf]
    %v2320 = vld [vmem:[%s2311 + $0x20] sm:$0xf]
    %v2321 = vld [vmem:[%s2311 + $0x24] sm:$0xf]
    %v2322 = vld [vmem:[%s2311 + $0x28] sm:$0xf]
    %v2323 = vld [vmem:[%s2311 + $0x2c] sm:$0xf]
    %v2324 = vld [vmem:[%s2311 + $0x30] sm:$0xf]
    %v2325 = vld [vmem:[%s2311 + $0x34] sm:$0xf]
    %v2326 = vld [vmem:[%s2311 + $0x38] sm:$0xf]
    %v2327 = vld [vmem:[%s2311 + $0x3c] sm:$0xf]
    %v2328 = vld [vmem:[%s2311 + $0x40] sm:$0xf]
    %v2329 = vld [vmem:[%s2311 + $0x44] sm:$0xf]
    %v2330 = vld [vmem:[%s2311 + $0x48] sm:$0xf]
    %v2331 = vld [vmem:[%s2311 + $0x4c] sm:$0xf]
    %v2332 = vld [vmem:[%s2311 + $0x50] sm:$0xf]
    %v2333 = vld [vmem:[%s2311 + $0x54] sm:$0xf]
    %v2334 = vld [vmem:[%s2311 + $0x58] sm:$0xf]
    %v2335 = vld [vmem:[%s2311 + $0x5c] sm:$0xf]
    %v2360 = vunpack.c.l.b16 %v2312
    %v2361 = vunpack.c.l.b16 %v2313
    %v2362 = vunpack.c.l.b16 %v2314
    %v2363 = vunpack.c.l.b16 %v2315
    %v2364 = vunpack.c.l.b16 %v2316
    %v2365 = vunpack.c.l.b16 %v2317
    %v2366 = vunpack.c.l.b16 %v2318
    %v2367 = vunpack.c.l.b16 %v2319
    %v2368 = vunpack.c.l.b16 %v2320
    %v2369 = vunpack.c.l.b16 %v2321
    %v2370 = vunpack.c.l.b16 %v2322
    %v2371 = vunpack.c.l.b16 %v2323
    %v2372 = vunpack.c.l.b16 %v2324
    %v2373 = vunpack.c.l.b16 %v2325
    %v2374 = vunpack.c.l.b16 %v2326
    %v2375 = vunpack.c.l.b16 %v2327
    %v2376 = vunpack.c.l.b16 %v2328
    %v2377 = vunpack.c.l.b16 %v2329
    %v2378 = vunpack.c.l.b16 %v2330
    %v2379 = vunpack.c.l.b16 %v2331
    %v2380 = vunpack.c.l.b16 %v2332
    %v2381 = vunpack.c.l.b16 %v2333
    %v2382 = vunpack.c.l.b16 %v2334
    %v2383 = vunpack.c.l.b16 %v2335
    %v2384 = vpack.c.b16 %v2361, %v2360
    %v2385 = vpack.c.b16 %v2363, %v2362
    %v2386 = vpack.c.b16 %v2365, %v2364
    %v2387 = vpack.c.b16 %v2367, %v2366
    %v2388 = vpack.c.b16 %v2369, %v2368
    %v2389 = vpack.c.b16 %v2371, %v2370
    %v2390 = vpack.c.b16 %v2373, %v2372
    %v2391 = vpack.c.b16 %v2375, %v2374
    %v2392 = vpack.c.b16 %v2377, %v2376
    %v2393 = vpack.c.b16 %v2379, %v2378
    %v2394 = vpack.c.b16 %v2381, %v2380
    %v2395 = vpack.c.b16 %v2383, %v2382
    %v2409 = vsel %vm1292, %v2310, 0
    %2411 = vmatprep.subr.bf16.mxu0 0
    %2412 = vmatpush1.bf16.msra.mxu0 %v2384
    %2413 = vmatprep.subr.bf16.mxu0 0
    %2414 = vmatpush1.bf16.msra.mxu0 %v2385
    %2415 = vmatprep.subr.bf16.mxu0 0
    %2416 = vmatpush1.bf16.msra.mxu0 %v2386
    %2417 = vmatprep.subr.bf16.mxu0 0
    %2418 = vmatpush1.bf16.msra.mxu0 %v2387
    %2419 = vmatprep.subr.bf16.mxu0 0
    %2420 = vmatpush1.bf16.msra.mxu0 %v2388
    %2421 = vmatprep.subr.bf16.mxu0 0
    %2422 = vmatpush1.bf16.msra.mxu0 %v2389
    %2423 = vmatprep.subr.bf16.mxu0 0
    %2424 = vmatpush1.bf16.msra.mxu0 %v2390
    %2425 = vmatprep.subr.bf16.mxu0 0
    %2426 = vmatpush1.bf16.msra.mxu0 %v2391
    %2427 = vmatprep.subr.bf16.mxu0 0
    %2428 = vmatpush1.bf16.msra.mxu0 %v2392
    %2429 = vmatprep.subr.bf16.mxu0 0
    %2430 = vmatpush1.bf16.msra.mxu0 %v2393
    %2431 = vmatprep.subr.bf16.mxu0 0
    %2432 = vmatpush1.bf16.msra.mxu0 %v2394
    %2433 = vmatprep.subr.bf16.mxu0 0
    %2434 = vmatpush1.bf16.msra.mxu0 %v2395
    %2435 = vmatprep.subr.bf16.mxu0 0
    %2436 = vmatpush1.bf16.msra.mxu0 0
    %2437 = vmatprep.subr.bf16.mxu0 0
    %2438 = vmatpush1.bf16.msra.mxu0 0
    %2439 = vmatprep.subr.bf16.mxu0 0
    %2440 = vmatpush1.bf16.msra.mxu0 0
    %2441 = vmatprep.subr.bf16.mxu0 0
    %2442 = vmatpush1.bf16.msra.mxu0 0
    %2443 = vmatprep.mubr.bf16.mxu0 %v2409
    %2444 = vmatmul.mubr.bf16.gmra.mrb[0].mxu0 %v2309
    %v2445 = vpop.f32.mrb[0].mxu0
    %v2446 = vadd.f32 0.0, %v2445
    %v2447 = vpop.f32.mrb[0].mxu0
    %v2448 = vpop.f32.mrb[0].mxu0
    %v2449 = vpop.f32.mrb[0].mxu0
    %2450 = vdwg.mxu0
    %v2451 = vadd.f32 %v2308, %v2446
    %v2452 = vpack.c.bf16 %v1161, %v1161
    %v2453 = vpack.c.bf16 %v1162, %v1162
    %s2454 = scalar_lea.vmem [#allocation2], 864
    %v2455 = vld [vmem:[%s2454] sm:$0xf]
    %v2456 = vld [vmem:[%s2454 + $0x4] sm:$0xf]
    %v2457 = vld [vmem:[%s2454 + $0x8] sm:$0xf]
    %v2458 = vld [vmem:[%s2454 + $0xc] sm:$0xf]
    %v2459 = vld [vmem:[%s2454 + $0x10] sm:$0xf]
    %v2460 = vld [vmem:[%s2454 + $0x14] sm:$0xf]
    %v2461 = vld [vmem:[%s2454 + $0x18] sm:$0xf]
    %v2462 = vld [vmem:[%s2454 + $0x1c] sm:$0xf]
    %v2463 = vld [vmem:[%s2454 + $0x20] sm:$0xf]
    %v2464 = vld [vmem:[%s2454 + $0x24] sm:$0xf]
    %v2465 = vld [vmem:[%s2454 + $0x28] sm:$0xf]
    %v2466 = vld [vmem:[%s2454 + $0x2c] sm:$0xf]
    %v2467 = vld [vmem:[%s2454 + $0x30] sm:$0xf]
    %v2468 = vld [vmem:[%s2454 + $0x34] sm:$0xf]
    %v2469 = vld [vmem:[%s2454 + $0x38] sm:$0xf]
    %v2470 = vld [vmem:[%s2454 + $0x3c] sm:$0xf]
    %v2471 = vld [vmem:[%s2454 + $0x40] sm:$0xf]
    %v2472 = vld [vmem:[%s2454 + $0x44] sm:$0xf]
    %v2473 = vld [vmem:[%s2454 + $0x48] sm:$0xf]
    %v2474 = vld [vmem:[%s2454 + $0x4c] sm:$0xf]
    %v2475 = vld [vmem:[%s2454 + $0x50] sm:$0xf]
    %v2476 = vld [vmem:[%s2454 + $0x54] sm:$0xf]
    %v2477 = vld [vmem:[%s2454 + $0x58] sm:$0xf]
    %v2478 = vld [vmem:[%s2454 + $0x5c] sm:$0xf]
    %v2503 = vunpack.c.l.b16 %v2455
    %v2504 = vunpack.c.l.b16 %v2456
    %v2505 = vunpack.c.l.b16 %v2457
    %v2506 = vunpack.c.l.b16 %v2458
    %v2507 = vunpack.c.l.b16 %v2459
    %v2508 = vunpack.c.l.b16 %v2460
    %v2509 = vunpack.c.l.b16 %v2461
    %v2510 = vunpack.c.l.b16 %v2462
    %v2511 = vunpack.c.l.b16 %v2463
    %v2512 = vunpack.c.l.b16 %v2464
    %v2513 = vunpack.c.l.b16 %v2465
    %v2514 = vunpack.c.l.b16 %v2466
    %v2515 = vunpack.c.l.b16 %v2467
    %v2516 = vunpack.c.l.b16 %v2468
    %v2517 = vunpack.c.l.b16 %v2469
    %v2518 = vunpack.c.l.b16 %v2470
    %v2519 = vunpack.c.l.b16 %v2471
    %v2520 = vunpack.c.l.b16 %v2472
    %v2521 = vunpack.c.l.b16 %v2473
    %v2522 = vunpack.c.l.b16 %v2474
    %v2523 = vunpack.c.l.b16 %v2475
    %v2524 = vunpack.c.l.b16 %v2476
    %v2525 = vunpack.c.l.b16 %v2477
    %v2526 = vunpack.c.l.b16 %v2478
    %v2527 = vpack.c.b16 %v2504, %v2503
    %v2528 = vpack.c.b16 %v2506, %v2505
    %v2529 = vpack.c.b16 %v2508, %v2507
    %v2530 = vpack.c.b16 %v2510, %v2509
    %v2531 = vpack.c.b16 %v2512, %v2511
    %v2532 = vpack.c.b16 %v2514, %v2513
    %v2533 = vpack.c.b16 %v2516, %v2515
    %v2534 = vpack.c.b16 %v2518, %v2517
    %v2535 = vpack.c.b16 %v2520, %v2519
    %v2536 = vpack.c.b16 %v2522, %v2521
    %v2537 = vpack.c.b16 %v2524, %v2523
    %v2538 = vpack.c.b16 %v2526, %v2525
    %v2552 = vsel %vm1292, %v2453, 0
    %2554 = vmatprep.subr.bf16.mxu0 0
    %2555 = vmatpush1.bf16.msra.mxu0 %v2527
    %2556 = vmatprep.subr.bf16.mxu0 0
    %2557 = vmatpush1.bf16.msra.mxu0 %v2528
    %2558 = vmatprep.subr.bf16.mxu0 0
    %2559 = vmatpush1.bf16.msra.mxu0 %v2529
    %2560 = vmatprep.subr.bf16.mxu0 0
    %2561 = vmatpush1.bf16.msra.mxu0 %v2530
    %2562 = vmatprep.subr.bf16.mxu0 0
    %2563 = vmatpush1.bf16.msra.mxu0 %v2531
    %2564 = vmatprep.subr.bf16.mxu0 0
    %2565 = vmatpush1.bf16.msra.mxu0 %v2532
    %2566 = vmatprep.subr.bf16.mxu0 0
    %2567 = vmatpush1.bf16.msra.mxu0 %v2533
    %2568 = vmatprep.subr.bf16.mxu0 0
    %2569 = vmatpush1.bf16.msra.mxu0 %v2534
    %2570 = vmatprep.subr.bf16.mxu0 0
    %2571 = vmatpush1.bf16.msra.mxu0 %v2535
    %2572 = vmatprep.subr.bf16.mxu0 0
    %2573 = vmatpush1.bf16.msra.mxu0 %v2536
    %2574 = vmatprep.subr.bf16.mxu0 0
    %2575 = vmatpush1.bf16.msra.mxu0 %v2537
    %2576 = vmatprep.subr.bf16.mxu0 0
    %2577 = vmatpush1.bf16.msra.mxu0 %v2538
    %2578 = vmatprep.subr.bf16.mxu0 0
    %2579 = vmatpush1.bf16.msra.mxu0 0
    %2580 = vmatprep.subr.bf16.mxu0 0
    %2581 = vmatpush1.bf16.msra.mxu0 0
    %2582 = vmatprep.subr.bf16.mxu0 0
    %2583 = vmatpush1.bf16.msra.mxu0 0
    %2584 = vmatprep.subr.bf16.mxu0 0
    %2585 = vmatpush1.bf16.msra.mxu0 0
    %2586 = vmatprep.mubr.bf16.mxu0 %v2552
    %2587 = vmatmul.mubr.bf16.gmra.mrb[0].mxu0 %v2452
    %v2588 = vpop.f32.mrb[0].mxu0
    %v2589 = vadd.f32 0.0, %v2588
    %v2590 = vpop.f32.mrb[0].mxu0
    %v2591 = vpop.f32.mrb[0].mxu0
    %v2592 = vpop.f32.mrb[0].mxu0
    %2593 = vdwg.mxu0
    %v2594 = vadd.f32 %v2451, %v2589
    %v2595 = vpack.c.bf16 %v1163, %v1163
    %v2596 = vpack.c.bf16 %v1164, %v1164
    %s2597 = scalar_lea.vmem [#allocation2], 960
    %v2598 = vld [vmem:[%s2597] sm:$0xf]
    %v2599 = vld [vmem:[%s2597 + $0x4] sm:$0xf]
    %v2600 = vld [vmem:[%s2597 + $0x8] sm:$0xf]
    %v2601 = vld [vmem:[%s2597 + $0xc] sm:$0xf]
    %v2602 = vld [vmem:[%s2597 + $0x10] sm:$0xf]
    %v2603 = vld [vmem:[%s2597 + $0x14] sm:$0xf]
    %v2604 = vld [vmem:[%s2597 + $0x18] sm:$0xf]
    %v2605 = vld [vmem:[%s2597 + $0x1c] sm:$0xf]
    %v2606 = vld [vmem:[%s2597 + $0x20] sm:$0xf]
    %v2607 = vld [vmem:[%s2597 + $0x24] sm:$0xf]
    %v2608 = vld [vmem:[%s2597 + $0x28] sm:$0xf]
    %v2609 = vld [vmem:[%s2597 + $0x2c] sm:$0xf]
    %v2610 = vld [vmem:[%s2597 + $0x30] sm:$0xf]
    %v2611 = vld [vmem:[%s2597 + $0x34] sm:$0xf]
    %v2612 = vld [vmem:[%s2597 + $0x38] sm:$0xf]
    %v2613 = vld [vmem:[%s2597 + $0x3c] sm:$0xf]
    %v2614 = vld [vmem:[%s2597 + $0x40] sm:$0xf]
    %v2615 = vld [vmem:[%s2597 + $0x44] sm:$0xf]
    %v2616 = vld [vmem:[%s2597 + $0x48] sm:$0xf]
    %v2617 = vld [vmem:[%s2597 + $0x4c] sm:$0xf]
    %v2618 = vld [vmem:[%s2597 + $0x50] sm:$0xf]
    %v2619 = vld [vmem:[%s2597 + $0x54] sm:$0xf]
    %v2620 = vld [vmem:[%s2597 + $0x58] sm:$0xf]
    %v2621 = vld [vmem:[%s2597 + $0x5c] sm:$0xf]
    %v2646 = vunpack.c.l.b16 %v2598
    %v2647 = vunpack.c.l.b16 %v2599
    %v2648 = vunpack.c.l.b16 %v2600
    %v2649 = vunpack.c.l.b16 %v2601
    %v2650 = vunpack.c.l.b16 %v2602
    %v2651 = vunpack.c.l.b16 %v2603
    %v2652 = vunpack.c.l.b16 %v2604
    %v2653 = vunpack.c.l.b16 %v2605
    %v2654 = vunpack.c.l.b16 %v2606
    %v2655 = vunpack.c.l.b16 %v2607
    %v2656 = vunpack.c.l.b16 %v2608
    %v2657 = vunpack.c.l.b16 %v2609
    %v2658 = vunpack.c.l.b16 %v2610
    %v2659 = vunpack.c.l.b16 %v2611
    %v2660 = vunpack.c.l.b16 %v2612
    %v2661 = vunpack.c.l.b16 %v2613
    %v2662 = vunpack.c.l.b16 %v2614
    %v2663 = vunpack.c.l.b16 %v2615
    %v2664 = vunpack.c.l.b16 %v2616
    %v2665 = vunpack.c.l.b16 %v2617
    %v2666 = vunpack.c.l.b16 %v2618
    %v2667 = vunpack.c.l.b16 %v2619
    %v2668 = vunpack.c.l.b16 %v2620
    %v2669 = vunpack.c.l.b16 %v2621
    %v2670 = vpack.c.b16 %v2647, %v2646
    %v2671 = vpack.c.b16 %v2649, %v2648
    %v2672 = vpack.c.b16 %v2651, %v2650
    %v2673 = vpack.c.b16 %v2653, %v2652
    %v2674 = vpack.c.b16 %v2655, %v2654
    %v2675 = vpack.c.b16 %v2657, %v2656
    %v2676 = vpack.c.b16 %v2659, %v2658
    %v2677 = vpack.c.b16 %v2661, %v2660
    %v2678 = vpack.c.b16 %v2663, %v2662
    %v2679 = vpack.c.b16 %v2665, %v2664
    %v2680 = vpack.c.b16 %v2667, %v2666
    %v2681 = vpack.c.b16 %v2669, %v2668
    %v2695 = vsel %vm1292, %v2596, 0
    %2697 = vmatprep.subr.bf16.mxu0 0
    %2698 = vmatpush1.bf16.msra.mxu0 %v2670
    %2699 = vmatprep.subr.bf16.mxu0 0
    %2700 = vmatpush1.bf16.msra.mxu0 %v2671
    %2701 = vmatprep.subr.bf16.mxu0 0
    %2702 = vmatpush1.bf16.msra.mxu0 %v2672
    %2703 = vmatprep.subr.bf16.mxu0 0
    %2704 = vmatpush1.bf16.msra.mxu0 %v2673
    %2705 = vmatprep.subr.bf16.mxu0 0
    %2706 = vmatpush1.bf16.msra.mxu0 %v2674
    %2707 = vmatprep.subr.bf16.mxu0 0
    %2708 = vmatpush1.bf16.msra.mxu0 %v2675
    %2709 = vmatprep.subr.bf16.mxu0 0
    %2710 = vmatpush1.bf16.msra.mxu0 %v2676
    %2711 = vmatprep.subr.bf16.mxu0 0
    %2712 = vmatpush1.bf16.msra.mxu0 %v2677
    %2713 = vmatprep.subr.bf16.mxu0 0
    %2714 = vmatpush1.bf16.msra.mxu0 %v2678
    %2715 = vmatprep.subr.bf16.mxu0 0
    %2716 = vmatpush1.bf16.msra.mxu0 %v2679
    %2717 = vmatprep.subr.bf16.mxu0 0
    %2718 = vmatpush1.bf16.msra.mxu0 %v2680
    %2719 = vmatprep.subr.bf16.mxu0 0
    %2720 = vmatpush1.bf16.msra.mxu0 %v2681
    %2721 = vmatprep.subr.bf16.mxu0 0
    %2722 = vmatpush1.bf16.msra.mxu0 0
    %2723 = vmatprep.subr.bf16.mxu0 0
    %2724 = vmatpush1.bf16.msra.mxu0 0
    %2725 = vmatprep.subr.bf16.mxu0 0
    %2726 = vmatpush1.bf16.msra.mxu0 0
    %2727 = vmatprep.subr.bf16.mxu0 0
    %2728 = vmatpush1.bf16.msra.mxu0 0
    %2729 = vmatprep.mubr.bf16.mxu0 %v2695
    %2730 = vmatmul.mubr.bf16.gmra.mrb[0].mxu0 %v2595
    %v2731 = vpop.f32.mrb[0].mxu0
    %v2732 = vadd.f32 0.0, %v2731
    %v2733 = vpop.f32.mrb[0].mxu0
    %v2734 = vpop.f32.mrb[0].mxu0
    %v2735 = vpop.f32.mrb[0].mxu0
    %2736 = vdwg.mxu0
    %v2737 = vadd.f32 %v2594, %v2732
    %v2738 = vpack.c.bf16 %v1165, %v1165
    %v2739 = vpack.c.bf16 %v1166, %v1166
    %s2740 = scalar_lea.vmem [#allocation2], 1056
    %v2741 = vld [vmem:[%s2740] sm:$0xf]
    %v2742 = vld [vmem:[%s2740 + $0x4] sm:$0xf]
    %v2743 = vld [vmem:[%s2740 + $0x8] sm:$0xf]
    %v2744 = vld [vmem:[%s2740 + $0xc] sm:$0xf]
    %v2745 = vld [vmem:[%s2740 + $0x10] sm:$0xf]
    %v2746 = vld [vmem:[%s2740 + $0x14] sm:$0xf]
    %v2747 = vld [vmem:[%s2740 + $0x18] sm:$0xf]
    %v2748 = vld [vmem:[%s2740 + $0x1c] sm:$0xf]
    %v2749 = vld [vmem:[%s2740 + $0x20] sm:$0xf]
    %v2750 = vld [vmem:[%s2740 + $0x24] sm:$0xf]
    %v2751 = vld [vmem:[%s2740 + $0x28] sm:$0xf]
    %v2752 = vld [vmem:[%s2740 + $0x2c] sm:$0xf]
    %v2753 = vld [vmem:[%s2740 + $0x30] sm:$0xf]
    %v2754 = vld [vmem:[%s2740 + $0x34] sm:$0xf]
    %v2755 = vld [vmem:[%s2740 + $0x38] sm:$0xf]
    %v2756 = vld [vmem:[%s2740 + $0x3c] sm:$0xf]
    %v2757 = vld [vmem:[%s2740 + $0x40] sm:$0xf]
    %v2758 = vld [vmem:[%s2740 + $0x44] sm:$0xf]
    %v2759 = vld [vmem:[%s2740 + $0x48] sm:$0xf]
    %v2760 = vld [vmem:[%s2740 + $0x4c] sm:$0xf]
    %v2761 = vld [vmem:[%s2740 + $0x50] sm:$0xf]
    %v2762 = vld [vmem:[%s2740 + $0x54] sm:$0xf]
    %v2763 = vld [vmem:[%s2740 + $0x58] sm:$0xf]
    %v2764 = vld [vmem:[%s2740 + $0x5c] sm:$0xf]
    %v2789 = vunpack.c.l.b16 %v2741
    %v2790 = vunpack.c.l.b16 %v2742
    %v2791 = vunpack.c.l.b16 %v2743
    %v2792 = vunpack.c.l.b16 %v2744
    %v2793 = vunpack.c.l.b16 %v2745
    %v2794 = vunpack.c.l.b16 %v2746
    %v2795 = vunpack.c.l.b16 %v2747
    %v2796 = vunpack.c.l.b16 %v2748
    %v2797 = vunpack.c.l.b16 %v2749
    %v2798 = vunpack.c.l.b16 %v2750
    %v2799 = vunpack.c.l.b16 %v2751
    %v2800 = vunpack.c.l.b16 %v2752
    %v2801 = vunpack.c.l.b16 %v2753
    %v2802 = vunpack.c.l.b16 %v2754
    %v2803 = vunpack.c.l.b16 %v2755
    %v2804 = vunpack.c.l.b16 %v2756
    %v2805 = vunpack.c.l.b16 %v2757
    %v2806 = vunpack.c.l.b16 %v2758
    %v2807 = vunpack.c.l.b16 %v2759
    %v2808 = vunpack.c.l.b16 %v2760
    %v2809 = vunpack.c.l.b16 %v2761
    %v2810 = vunpack.c.l.b16 %v2762
    %v2811 = vunpack.c.l.b16 %v2763
    %v2812 = vunpack.c.l.b16 %v2764
    %v2813 = vpack.c.b16 %v2790, %v2789
    %v2814 = vpack.c.b16 %v2792, %v2791
    %v2815 = vpack.c.b16 %v2794, %v2793
    %v2816 = vpack.c.b16 %v2796, %v2795
    %v2817 = vpack.c.b16 %v2798, %v2797
    %v2818 = vpack.c.b16 %v2800, %v2799
    %v2819 = vpack.c.b16 %v2802, %v2801
    %v2820 = vpack.c.b16 %v2804, %v2803
    %v2821 = vpack.c.b16 %v2806, %v2805
    %v2822 = vpack.c.b16 %v2808, %v2807
    %v2823 = vpack.c.b16 %v2810, %v2809
    %v2824 = vpack.c.b16 %v2812, %v2811
    %v2838 = vsel %vm1292, %v2739, 0
    %2840 = vmatprep.subr.bf16.mxu0 0
    %2841 = vmatpush1.bf16.msra.mxu0 %v2813
    %2842 = vmatprep.subr.bf16.mxu0 0
    %2843 = vmatpush1.bf16.msra.mxu0 %v2814
    %2844 = vmatprep.subr.bf16.mxu0 0
    %2845 = vmatpush1.bf16.msra.mxu0 %v2815
    %2846 = vmatprep.subr.bf16.mxu0 0
    %2847 = vmatpush1.bf16.msra.mxu0 %v2816
    %2848 = vmatprep.subr.bf16.mxu0 0
    %2849 = vmatpush1.bf16.msra.mxu0 %v2817
    %2850 = vmatprep.subr.bf16.mxu0 0
    %2851 = vmatpush1.bf16.msra.mxu0 %v2818
    %2852 = vmatprep.subr.bf16.mxu0 0
    %2853 = vmatpush1.bf16.msra.mxu0 %v2819
    %2854 = vmatprep.subr.bf16.mxu0 0
    %2855 = vmatpush1.bf16.msra.mxu0 %v2820
    %2856 = vmatprep.subr.bf16.mxu0 0
    %2857 = vmatpush1.bf16.msra.mxu0 %v2821
    %2858 = vmatprep.subr.bf16.mxu0 0
    %2859 = vmatpush1.bf16.msra.mxu0 %v2822
    %2860 = vmatprep.subr.bf16.mxu0 0
    %2861 = vmatpush1.bf16.msra.mxu0 %v2823
    %2862 = vmatprep.subr.bf16.mxu0 0
    %2863 = vmatpush1.bf16.msra.mxu0 %v2824
    %2864 = vmatprep.subr.bf16.mxu0 0
    %2865 = vmatpush1.bf16.msra.mxu0 0
    %2866 = vmatprep.subr.bf16.mxu0 0
    %2867 = vmatpush1.bf16.msra.mxu0 0
    %2868 = vmatprep.subr.bf16.mxu0 0
    %2869 = vmatpush1.bf16.msra.mxu0 0
    %2870 = vmatprep.subr.bf16.mxu0 0
    %2871 = vmatpush1.bf16.msra.mxu0 0
    %2872 = vmatprep.mubr.bf16.mxu0 %v2838
    %2873 = vmatmul.mubr.bf16.gmra.mrb[0].mxu0 %v2738
    %v2874 = vpop.f32.mrb[0].mxu0
    %v2875 = vadd.f32 0.0, %v2874
    %v2876 = vpop.f32.mrb[0].mxu0
    %v2877 = vpop.f32.mrb[0].mxu0
    %v2878 = vpop.f32.mrb[0].mxu0
    %2879 = vdwg.mxu0
    %v2880 = vadd.f32 %v2737, %v2875
    %v2881 = vld [vmem:[%s6] sm:$0x1]
    %v2883 = vlaneseq
    %v2884 = vshrl.u32 %v2883, 7
    %v2885 = vsub.s32 0, %v2884
    %v2886 = vrot.slane %v2881, %v2885
    %v2888 = vadd.f32 %v2880, %v2886
    %2889 = vst [vmem:[%s7] sm:$0xff] %v2888
    // Predicated region
    $region34: #{image_classifier_forward.1} parent=1 // pred_check
      _
    $region35: #{image_classifier_forward.1} parent=1 // pred_check_branch
      %2891 = sbr.rel (0) target = $region37
    $region36: #{image_classifier_forward.1} parent=1 // pred_region
      _
    $region37: #{image_classifier_forward.1} parent=1 // pred_fallthru
      _
    // Predicated region
    $region38: #{image_classifier_forward.1} parent=1 // pred_check
      _
    $region39: #{image_classifier_forward.1} parent=1 // pred_check_branch
      %2893 = sbr.rel (0) target = $region41
    $region40: #{image_classifier_forward.1} parent=1 // pred_region
      _
    $region41: #{image_classifier_forward.1} parent=1 // pred_fallthru
      _
    %2894 = vsyncpa [#allocation3], 1

</llo_original>
